<compile_context>
chip_gen: v7x
topology: tpu7x:2x2x1
jax: 0.10.0
libtpu: 0.0.40
codegen_flags: <defaults>
</compile_context>

<pallas_src>
import functools

import jax
import jax.numpy as jnp
from jax.experimental import pallas as pl
from jax.experimental.pallas import tpu as pltpu

HIDDEN_D = 4
IN_FEATURES = 12
IN_FEATURES_D = IN_FEATURES + 3  # 15
BN_EPS = 1e-5
LEAKY_SLOPE = 0.2
SUB = 8  # sublanes per vreg: the batch packs 8-wide onto sublanes


def _round_up(x, m):
    return ((x + m - 1) // m) * m


def _disc_kernel(B, TBL,
                 x_ref,
                 w1_ref, b1_ref, g1_ref, be1_ref,
                 w2_ref, b2_ref, g2_ref, be2_ref,
                 w3_ref, b3_ref,
                 o_ref,
                 h_scr, sum1, sq1, sum2, sq2):
    """Grid = (phase, batch_tile).

    Layout: batch element n = 8*c + s lives at sublane s, lane-column c.
      x_ref : [15*8, TBL]   feature k at sublane rows k*8 .. k*8+7
      o_ref : [8, TBL]
      h_scr : [2*4*8, Cp]   h1 feature j at rows j*8.. , h2 feature j at rows (4+j)*8..
    """
    p = pl.program_id(0)   # 0: linear1, 1: bn1+lrelu+linear2, 2: bn2+lrelu+linear3+sigmoid
    i = pl.program_id(1)   # batch (column) tile index
    col0 = pl.multiple_of(i * TBL, TBL)
    inv_b = 1.0 / float(B)  # 1/N for biased batch statistics

    @pl.when(jnp.logical_and(p == 0, i == 0))
    def _init_stats():
        for j in range(HIDDEN_D):
            sum1[j] = jnp.float32(0.0)
            sq1[j] = jnp.float32(0.0)
            sum2[j] = jnp.float32(0.0)
            sq2[j] = jnp.float32(0.0)

    def batch_mask():
        # 1.0 for real batch elements, 0.0 for padded slots of the last tile.
        s = jax.lax.broadcasted_iota(jnp.int32, (SUB, TBL), 0)
        c = jax.lax.broadcasted_iota(jnp.int32, (SUB, TBL), 1) + i * TBL
        return (c * SUB + s < B).astype(jnp.float32)

    # ---------------- phase 0: Linear(15 -> 4) + stats of its output ----------------
    @pl.when(p == 0)
    def _phase0():
        maskf = batch_mask()
        acc = [None] * HIDDEN_D
        for k in range(IN_FEATURES_D):
            row = x_ref[pl.ds(k * SUB, SUB), :]                  # (8, TBL)
            for j in range(HIDDEN_D):
                term = row * w1_ref[k * HIDDEN_D + j]            # scalar*vector FMA on VPU
                acc[j] = term if acc[j] is None else acc[j] + term
        for j in range(HIDDEN_D):
            hj = acc[j] + b1_ref[j]
            h_scr[pl.ds(j * SUB, SUB), pl.ds(col0, TBL)] = hj
            sum1[j] = sum1[j] + jnp.sum(hj * maskf)
            sq1[j] = sq1[j] + jnp.sum(hj * hj * maskf)

    # ------------- phase 1: BN1 + LeakyReLU + Linear(4 -> 4) + stats ----------------
    @pl.when(p == 1)
    def _phase1():
        maskf = batch_mask()
        hn = []
        for j in range(HIDDEN_D):
            mean = sum1[j] * inv_b
            var = sq1[j] * inv_b - mean * mean                   # biased batch variance
            hj = h_scr[pl.ds(j * SUB, SUB), pl.ds(col0, TBL)]
            inv_std = jax.lax.rsqrt(jnp.broadcast_to(var + BN_EPS, hj.shape))
            hj = (hj - mean) * inv_std * g1_ref[j] + be1_ref[j]
            hn.append(jnp.where(hj > 0.0, hj, LEAKY_SLOPE * hj))
        for j in range(HIDDEN_D):
            acc = hn[0] * w2_ref[0 * HIDDEN_D + j]
            for k in range(1, HIDDEN_D):
                acc = acc + hn[k] * w2_ref[k * HIDDEN_D + j]
            acc = acc + b2_ref[j]
            h_scr[pl.ds((HIDDEN_D + j) * SUB, SUB), pl.ds(col0, TBL)] = acc
            sum2[j] = sum2[j] + jnp.sum(acc * maskf)
            sq2[j] = sq2[j] + jnp.sum(acc * acc * maskf)

    # --------- phase 2: BN2 + LeakyReLU + Linear(4 -> 1) + Sigmoid -> [8, TBL] -------
    @pl.when(p == 2)
    def _phase2():
        logits = None
        for j in range(HIDDEN_D):
            mean = sum2[j] * inv_b
            var = sq2[j] * inv_b - mean * mean
            hj = h_scr[pl.ds((HIDDEN_D + j) * SUB, SUB), pl.ds(col0, TBL)]
            inv_std = jax.lax.rsqrt(jnp.broadcast_to(var + BN_EPS, hj.shape))
            hj = (hj - mean) * inv_std * g2_ref[j] + be2_ref[j]
            hj = jnp.where(hj > 0.0, hj, LEAKY_SLOPE * hj)
            term = hj * w3_ref[j]
            logits = term if logits is None else logits + term
        logits = logits + b3_ref[0]
        # exp goes to the EUP; exact reciprocal keeps tight agreement with f32 ref.
        o_ref[...] = pl.reciprocal(1.0 + jnp.exp(-logits), approx=False)


def discriminator_forward(x, params, *, tile_b=2048):
    """x: [B, 15] float32.  params: dict from init_params.  Returns [B, 1]."""
    B, F = x.shape
    assert F == IN_FEATURES_D
    c_min = -(-B // SUB)                                    # columns needed for B elements
    tbl_target = max(_round_up(tile_b // SUB, 128), 128)
    TBL = min(tbl_target, _round_up(c_min, 128))            # lane tile, multiple of 128
    Cp = _round_up(c_min, TBL)
    Bp = SUB * Cp
    num_tiles = Cp // TBL

    # Pack batch onto sublanes x lanes: row f*8+s, column c  <-  x[c*8+s, f].
    xp = jnp.pad(x.astype(jnp.float32), ((0, Bp - B), (0, 0)))            # [Bp, 15]
    xt = xp.reshape(Cp, SUB, IN_FEATURES_D).transpose(2, 1, 0)            # [15, 8, Cp]
    xt = xt.reshape(IN_FEATURES_D * SUB, Cp)                              # [120, Cp]

    flat = lambda a: a.reshape(-1).astype(jnp.float32)
    weight_args = (
        flat(params["w1"]), flat(params["b1"]), flat(params["g1"]), flat(params["be1"]),
        flat(params["w2"]), flat(params["b2"]), flat(params["g2"]), flat(params["be2"]),
        flat(params["w3"]), flat(params["b3"]),
    )
    smem_spec = pl.BlockSpec(memory_space=pltpu.MemorySpace.SMEM)

    grid_spec = pltpu.PrefetchScalarGridSpec(
        num_scalar_prefetch=0,
        grid=(3, num_tiles),
        in_specs=[
            # x is only consumed in phase 0; pin it to tile 0 afterwards so it is
            # not re-streamed from HBM during phases 1/2.
            pl.BlockSpec((IN_FEATURES_D * SUB, TBL),
                         lambda p, i: (0, jnp.where(p == 0, i, 0))),
        ] + [smem_spec] * len(weight_args),
        # Output tile only advances during phase 2 -> exactly one lane-dense
        # write-back per batch tile.
        out_specs=pl.BlockSpec((SUB, TBL), lambda p, i: (0, jnp.where(p == 2, i, 0))),
        scratch_shapes=[
            pltpu.VMEM((2 * HIDDEN_D * SUB, Cp), jnp.float32),  # h1 (rows 0..31), h2 (rows 32..63)
            pltpu.SMEM((HIDDEN_D,), jnp.float32),               # sum(h1)  per feature
            pltpu.SMEM((HIDDEN_D,), jnp.float32),               # sum(h1^2)
            pltpu.SMEM((HIDDEN_D,), jnp.float32),               # sum(h2)
            pltpu.SMEM((HIDDEN_D,), jnp.float32),               # sum(h2^2)
        ],
    )

    out = pl.pallas_call(
        functools.partial(_disc_kernel, B, TBL),
        out_shape=jax.ShapeDtypeStruct((SUB, Cp), jnp.float32),
        grid_spec=grid_spec,
        compiler_params=pltpu.CompilerParams(
            dimension_semantics=("arbitrary", "arbitrary"),
            vmem_limit_bytes=32 * 1024 * 1024,
        ),
    )(xt, *weight_args)

    # out[s, c] is batch element c*8+s  ->  transpose + flatten restores batch order.
    return out.T.reshape(Bp)[:B].reshape(B, 1)


def init_params(key):
    """PyTorch-style init: Linear uniform(+/-1/sqrt(fan_in)), BN gamma=1 / beta=0.
    Linear weights stored as [in, out]."""
    ks = jax.random.split(key, 6)

    def linear(kw, kb, fan_in, fan_out):
        bound = 1.0 / jnp.sqrt(jnp.float32(fan_in))
        w = jax.random.uniform(kw, (fan_in, fan_out), jnp.float32, -bound, bound)
        b = jax.random.uniform(kb, (fan_out,), jnp.float32, -bound, bound)
        return w, b

    w1, b1 = linear(ks[0], ks[1], IN_FEATURES_D, HIDDEN_D)
    w2, b2 = linear(ks[2], ks[3], HIDDEN_D, HIDDEN_D)
    w3, b3 = linear(ks[4], ks[5], HIDDEN_D, 1)
    return {
        "w1": w1, "b1": b1,
        "g1": jnp.ones((HIDDEN_D,), jnp.float32), "be1": jnp.zeros((HIDDEN_D,), jnp.float32),
        "w2": w2, "b2": b2,
        "g2": jnp.ones((HIDDEN_D,), jnp.float32), "be2": jnp.zeros((HIDDEN_D,), jnp.float32),
        "w3": w3, "b3": b3,
    }


def _reference_forward(x, p):
    """Pure-JAX reference (training-mode BatchNorm with batch stats)."""
    h = x @ p["w1"] + p["b1"]
    m = h.mean(0); v = ((h - m) ** 2).mean(0)
    h = (h - m) / jnp.sqrt(v + BN_EPS) * p["g1"] + p["be1"]
    h = jnp.where(h > 0, h, LEAKY_SLOPE * h)
    h = h @ p["w2"] + p["b2"]
    m = h.mean(0); v = ((h - m) ** 2).mean(0)
    h = (h - m) / jnp.sqrt(v + BN_EPS) * p["g2"] + p["be2"]
    h = jnp.where(h > 0, h, LEAKY_SLOPE * h)
    return jax.nn.sigmoid(h @ p["w3"] + p["b3"])


if __name__ == "__main__":
    key = jax.random.PRNGKey(0)
    k_x, k_p, k_x2 = jax.random.split(key, 3)
    params = init_params(k_p)

    # Small batch (single tile, heavy masking of padded slots).
    B = 8
    x = jax.random.normal(k_x, (B, IN_FEATURES_D), jnp.float32)
    out = jax.block_until_ready(discriminator_forward(x, params))
    ref = _reference_forward(x, params)
    assert out.shape == (B, 1)
    assert jnp.allclose(out, ref, atol=1e-3, rtol=1e-3), "mismatch vs JAX reference (B=8)"

    # Larger, non-multiple-of-tile batch with a small tile -> multi-tile pipeline,
    # masked stats on the last tile, pinned-x index_map in phases 1/2.
    B2 = 1500
    x2 = jax.random.normal(k_x2, (B2, IN_FEATURES_D), jnp.float32)
    out2 = jax.block_until_ready(discriminator_forward(x2, params, tile_b=1024))
    ref2 = _reference_forward(x2, params)
    assert out2.shape == (B2, 1)
    assert jnp.allclose(out2, ref2, atol=1e-3, rtol=1e-3), "mismatch vs JAX reference (B=1500)"

    print("KERNEL_OK")
</pallas_src>

<mosaic_0001>
module attributes {stable_mosaic.version = 11 : i64} {
  func.func @_disc_kernel(%arg0: i32, %arg1: i32, %arg2: memref<120x128xf32, #tpu.memory_space<vmem>>, %arg3: memref<60xf32, #tpu.memory_space<smem>>, %arg4: memref<4xf32, #tpu.memory_space<smem>>, %arg5: memref<4xf32, #tpu.memory_space<smem>>, %arg6: memref<4xf32, #tpu.memory_space<smem>>, %arg7: memref<16xf32, #tpu.memory_space<smem>>, %arg8: memref<4xf32, #tpu.memory_space<smem>>, %arg9: memref<4xf32, #tpu.memory_space<smem>>, %arg10: memref<4xf32, #tpu.memory_space<smem>>, %arg11: memref<4xf32, #tpu.memory_space<smem>>, %arg12: memref<1xf32, #tpu.memory_space<smem>>, %arg13: memref<8x128xf32, #tpu.memory_space<vmem>>, %arg14: memref<64x128xf32, #tpu.memory_space<vmem>>, %arg15: memref<4xf32, #tpu.memory_space<smem>>, %arg16: memref<4xf32, #tpu.memory_space<smem>>, %arg17: memref<4xf32, #tpu.memory_space<smem>>, %arg18: memref<4xf32, #tpu.memory_space<smem>>) attributes {dimension_semantics = [#tpu.dimension_semantics<arbitrary>, #tpu.dimension_semantics<arbitrary>], iteration_bounds = array<i64: 3, 1>, scalar_prefetch = 0 : i64, scratch_operands = 5 : i64, tpu.core_type = #tpu.core_type<tc>, window_params = [{transform_indices = @transform_0, window_bounds = array<i64: 120, 128>}, {transform_indices = @transform_1, window_bounds = array<i64: 60>}, {transform_indices = @transform_2, window_bounds = array<i64: 4>}, {transform_indices = @transform_3, window_bounds = array<i64: 4>}, {transform_indices = @transform_4, window_bounds = array<i64: 4>}, {transform_indices = @transform_5, window_bounds = array<i64: 16>}, {transform_indices = @transform_6, window_bounds = array<i64: 4>}, {transform_indices = @transform_7, window_bounds = array<i64: 4>}, {transform_indices = @transform_8, window_bounds = array<i64: 4>}, {transform_indices = @transform_9, window_bounds = array<i64: 4>}, {transform_indices = @transform_10, window_bounds = array<i64: 1>}, {transform_indices = @transform_11, window_bounds = array<i64: 8, 128>}]} {
    %c128_i32 = arith.constant 128 : i32
    %0 = arith.muli %arg1, %c128_i32 : i32
    %1 = tpu.assume_multiple %0, 128 : i32
    %c0_i32 = arith.constant 0 : i32
    %2 = arith.cmpi eq, %arg0, %c0_i32 : i32
    %c0_i32_0 = arith.constant 0 : i32
    %3 = arith.cmpi eq, %arg1, %c0_i32_0 : i32
    %4 = arith.andi %2, %3 : i1
    %5 = arith.extui %4 : i1 to i32
    %c0_i32_1 = arith.constant 0 : i32
    %6 = arith.cmpi ne, %5, %c0_i32_1 : i32
    scf.if %6 {
      %cst = arith.constant 0.000000e+00 : f32
      %c0 = arith.constant 0 : index
      %16 = memref.load %arg15[%c0] : memref<4xf32, #tpu.memory_space<smem>>
      memref.store %cst, %arg15[%c0] : memref<4xf32, #tpu.memory_space<smem>>
      %cst_6 = arith.constant 0.000000e+00 : f32
      %c0_7 = arith.constant 0 : index
      %17 = memref.load %arg16[%c0_7] : memref<4xf32, #tpu.memory_space<smem>>
      memref.store %cst_6, %arg16[%c0_7] : memref<4xf32, #tpu.memory_space<smem>>
      %cst_8 = arith.constant 0.000000e+00 : f32
      %c0_9 = arith.constant 0 : index
      %18 = memref.load %arg17[%c0_9] : memref<4xf32, #tpu.memory_space<smem>>
      memref.store %cst_8, %arg17[%c0_9] : memref<4xf32, #tpu.memory_space<smem>>
      %cst_10 = arith.constant 0.000000e+00 : f32
      %c0_11 = arith.constant 0 : index
      %19 = memref.load %arg18[%c0_11] : memref<4xf32, #tpu.memory_space<smem>>
      memref.store %cst_10, %arg18[%c0_11] : memref<4xf32, #tpu.memory_space<smem>>
      %cst_12 = arith.constant 0.000000e+00 : f32
      %c1 = arith.constant 1 : index
      %20 = memref.load %arg15[%c1] : memref<4xf32, #tpu.memory_space<smem>>
      memref.store %cst_12, %arg15[%c1] : memref<4xf32, #tpu.memory_space<smem>>
      %cst_13 = arith.constant 0.000000e+00 : f32
      %c1_14 = arith.constant 1 : index
      %21 = memref.load %arg16[%c1_14] : memref<4xf32, #tpu.memory_space<smem>>
      memref.store %cst_13, %arg16[%c1_14] : memref<4xf32, #tpu.memory_space<smem>>
      %cst_15 = arith.constant 0.000000e+00 : f32
      %c1_16 = arith.constant 1 : index
      %22 = memref.load %arg17[%c1_16] : memref<4xf32, #tpu.memory_space<smem>>
      memref.store %cst_15, %arg17[%c1_16] : memref<4xf32, #tpu.memory_space<smem>>
      %cst_17 = arith.constant 0.000000e+00 : f32
      %c1_18 = arith.constant 1 : index
      %23 = memref.load %arg18[%c1_18] : memref<4xf32, #tpu.memory_space<smem>>
      memref.store %cst_17, %arg18[%c1_18] : memref<4xf32, #tpu.memory_space<smem>>
      %cst_19 = arith.constant 0.000000e+00 : f32
      %c2 = arith.constant 2 : index
      %24 = memref.load %arg15[%c2] : memref<4xf32, #tpu.memory_space<smem>>
      memref.store %cst_19, %arg15[%c2] : memref<4xf32, #tpu.memory_space<smem>>
      %cst_20 = arith.constant 0.000000e+00 : f32
      %c2_21 = arith.constant 2 : index
      %25 = memref.load %arg16[%c2_21] : memref<4xf32, #tpu.memory_space<smem>>
      memref.store %cst_20, %arg16[%c2_21] : memref<4xf32, #tpu.memory_space<smem>>
      %cst_22 = arith.constant 0.000000e+00 : f32
      %c2_23 = arith.constant 2 : index
      %26 = memref.load %arg17[%c2_23] : memref<4xf32, #tpu.memory_space<smem>>
      memref.store %cst_22, %arg17[%c2_23] : memref<4xf32, #tpu.memory_space<smem>>
      %cst_24 = arith.constant 0.000000e+00 : f32
      %c2_25 = arith.constant 2 : index
      %27 = memref.load %arg18[%c2_25] : memref<4xf32, #tpu.memory_space<smem>>
      memref.store %cst_24, %arg18[%c2_25] : memref<4xf32, #tpu.memory_space<smem>>
      %cst_26 = arith.constant 0.000000e+00 : f32
      %c3 = arith.constant 3 : index
      %28 = memref.load %arg15[%c3] : memref<4xf32, #tpu.memory_space<smem>>
      memref.store %cst_26, %arg15[%c3] : memref<4xf32, #tpu.memory_space<smem>>
      %cst_27 = arith.constant 0.000000e+00 : f32
      %c3_28 = arith.constant 3 : index
      %29 = memref.load %arg16[%c3_28] : memref<4xf32, #tpu.memory_space<smem>>
      memref.store %cst_27, %arg16[%c3_28] : memref<4xf32, #tpu.memory_space<smem>>
      %cst_29 = arith.constant 0.000000e+00 : f32
      %c3_30 = arith.constant 3 : index
      %30 = memref.load %arg17[%c3_30] : memref<4xf32, #tpu.memory_space<smem>>
      memref.store %cst_29, %arg17[%c3_30] : memref<4xf32, #tpu.memory_space<smem>>
      %cst_31 = arith.constant 0.000000e+00 : f32
      %c3_32 = arith.constant 3 : index
      %31 = memref.load %arg18[%c3_32] : memref<4xf32, #tpu.memory_space<smem>>
      memref.store %cst_31, %arg18[%c3_32] : memref<4xf32, #tpu.memory_space<smem>>
    } else {
    }
    %c0_i32_2 = arith.constant 0 : i32
    %7 = arith.cmpi eq, %arg0, %c0_i32_2 : i32
    %8 = arith.extui %7 : i1 to i32
    %c0_i32_3 = arith.constant 0 : i32
    %9 = arith.cmpi ne, %8, %c0_i32_3 : i32
    scf.if %9 {
      %16 = tpu.iota {dimensions = array<i32: 0>} : vector<8x128xi32>
      %17 = tpu.iota {dimensions = array<i32: 1>} : vector<8x128xi32>
      %c128_i32_6 = arith.constant 128 : i32
      %18 = arith.muli %arg1, %c128_i32_6 : i32
      %19 = vector.broadcast %18 : i32 to vector<8x128xi32>
      %20 = arith.addi %17, %19 : vector<8x128xi32>
      %c8_i32 = arith.constant 8 : i32
      %21 = vector.broadcast %c8_i32 : i32 to vector<8x128xi32>
      %22 = arith.muli %20, %21 : vector<8x128xi32>
      %23 = arith.addi %22, %16 : vector<8x128xi32>
      %c8_i32_7 = arith.constant 8 : i32
      %24 = vector.broadcast %c8_i32_7 : i32 to vector<8x128xi32>
      %25 = arith.cmpi slt, %23, %24 : vector<8x128xi32>
      %26 = arith.extui %25 : vector<8x128xi1> to vector<8x128xi32>
      %27 = arith.sitofp %26 : vector<8x128xi32> to vector<8x128xf32>
      %c0 = arith.constant 0 : index
      %c0_8 = arith.constant 0 : index
      %28 = vector.load %arg2[%c0, %c0_8] : memref<120x128xf32, #tpu.memory_space<vmem>>, vector<8x128xf32>
      %c0_9 = arith.constant 0 : index
      %29 = memref.load %arg3[%c0_9] : memref<60xf32, #tpu.memory_space<smem>>
      %30 = vector.broadcast %29 : f32 to vector<8x128xf32>
      %31 = arith.mulf %28, %30 : vector<8x128xf32>
      %c1 = arith.constant 1 : index
      %32 = memref.load %arg3[%c1] : memref<60xf32, #tpu.memory_space<smem>>
      %33 = vector.broadcast %32 : f32 to vector<8x128xf32>
      %34 = arith.mulf %28, %33 : vector<8x128xf32>
      %c2 = arith.constant 2 : index
      %35 = memref.load %arg3[%c2] : memref<60xf32, #tpu.memory_space<smem>>
      %36 = vector.broadcast %35 : f32 to vector<8x128xf32>
      %37 = arith.mulf %28, %36 : vector<8x128xf32>
      %c3 = arith.constant 3 : index
      %38 = memref.load %arg3[%c3] : memref<60xf32, #tpu.memory_space<smem>>
      %39 = vector.broadcast %38 : f32 to vector<8x128xf32>
      %40 = arith.mulf %28, %39 : vector<8x128xf32>
      %c8 = arith.constant 8 : index
      %c0_10 = arith.constant 0 : index
      %41 = vector.load %arg2[%c8, %c0_10] : memref<120x128xf32, #tpu.memory_space<vmem>>, vector<8x128xf32>
      %c4 = arith.constant 4 : index
      %42 = memref.load %arg3[%c4] : memref<60xf32, #tpu.memory_space<smem>>
      %43 = vector.broadcast %42 : f32 to vector<8x128xf32>
      %44 = arith.mulf %41, %43 : vector<8x128xf32>
      %45 = arith.addf %31, %44 : vector<8x128xf32>
      %c5 = arith.constant 5 : index
      %46 = memref.load %arg3[%c5] : memref<60xf32, #tpu.memory_space<smem>>
      %47 = vector.broadcast %46 : f32 to vector<8x128xf32>
      %48 = arith.mulf %41, %47 : vector<8x128xf32>
      %49 = arith.addf %34, %48 : vector<8x128xf32>
      %c6 = arith.constant 6 : index
      %50 = memref.load %arg3[%c6] : memref<60xf32, #tpu.memory_space<smem>>
      %51 = vector.broadcast %50 : f32 to vector<8x128xf32>
      %52 = arith.mulf %41, %51 : vector<8x128xf32>
      %53 = arith.addf %37, %52 : vector<8x128xf32>
      %c7 = arith.constant 7 : index
      %54 = memref.load %arg3[%c7] : memref<60xf32, #tpu.memory_space<smem>>
      %55 = vector.broadcast %54 : f32 to vector<8x128xf32>
      %56 = arith.mulf %41, %55 : vector<8x128xf32>
      %57 = arith.addf %40, %56 : vector<8x128xf32>
      %c16 = arith.constant 16 : index
      %c0_11 = arith.constant 0 : index
      %58 = vector.load %arg2[%c16, %c0_11] : memref<120x128xf32, #tpu.memory_space<vmem>>, vector<8x128xf32>
      %c8_12 = arith.constant 8 : index
      %59 = memref.load %arg3[%c8_12] : memref<60xf32, #tpu.memory_space<smem>>
      %60 = vector.broadcast %59 : f32 to vector<8x128xf32>
      %61 = arith.mulf %58, %60 : vector<8x128xf32>
      %62 = arith.addf %45, %61 : vector<8x128xf32>
      %c9 = arith.constant 9 : index
      %63 = memref.load %arg3[%c9] : memref<60xf32, #tpu.memory_space<smem>>
      %64 = vector.broadcast %63 : f32 to vector<8x128xf32>
      %65 = arith.mulf %58, %64 : vector<8x128xf32>
      %66 = arith.addf %49, %65 : vector<8x128xf32>
      %c10 = arith.constant 10 : index
      %67 = memref.load %arg3[%c10] : memref<60xf32, #tpu.memory_space<smem>>
      %68 = vector.broadcast %67 : f32 to vector<8x128xf32>
      %69 = arith.mulf %58, %68 : vector<8x128xf32>
      %70 = arith.addf %53, %69 : vector<8x128xf32>
      %c11 = arith.constant 11 : index
      %71 = memref.load %arg3[%c11] : memref<60xf32, #tpu.memory_space<smem>>
      %72 = vector.broadcast %71 : f32 to vector<8x128xf32>
      %73 = arith.mulf %58, %72 : vector<8x128xf32>
      %74 = arith.addf %57, %73 : vector<8x128xf32>
      %c24 = arith.constant 24 : index
      %c0_13 = arith.constant 0 : index
      %75 = vector.load %arg2[%c24, %c0_13] : memref<120x128xf32, #tpu.memory_space<vmem>>, vector<8x128xf32>
      %c12 = arith.constant 12 : index
      %76 = memref.load %arg3[%c12] : memref<60xf32, #tpu.memory_space<smem>>
      %77 = vector.broadcast %76 : f32 to vector<8x128xf32>
      %78 = arith.mulf %75, %77 : vector<8x128xf32>
      %79 = arith.addf %62, %78 : vector<8x128xf32>
      %c13 = arith.constant 13 : index
      %80 = memref.load %arg3[%c13] : memref<60xf32, #tpu.memory_space<smem>>
      %81 = vector.broadcast %80 : f32 to vector<8x128xf32>
      %82 = arith.mulf %75, %81 : vector<8x128xf32>
      %83 = arith.addf %66, %82 : vector<8x128xf32>
      %c14 = arith.constant 14 : index
      %84 = memref.load %arg3[%c14] : memref<60xf32, #tpu.memory_space<smem>>
      %85 = vector.broadcast %84 : f32 to vector<8x128xf32>
      %86 = arith.mulf %75, %85 : vector<8x128xf32>
      %87 = arith.addf %70, %86 : vector<8x128xf32>
      %c15 = arith.constant 15 : index
      %88 = memref.load %arg3[%c15] : memref<60xf32, #tpu.memory_space<smem>>
      %89 = vector.broadcast %88 : f32 to vector<8x128xf32>
      %90 = arith.mulf %75, %89 : vector<8x128xf32>
      %91 = arith.addf %74, %90 : vector<8x128xf32>
      %c32 = arith.constant 32 : index
      %c0_14 = arith.constant 0 : index
      %92 = vector.load %arg2[%c32, %c0_14] : memref<120x128xf32, #tpu.memory_space<vmem>>, vector<8x128xf32>
      %c16_15 = arith.constant 16 : index
      %93 = memref.load %arg3[%c16_15] : memref<60xf32, #tpu.memory_space<smem>>
      %94 = vector.broadcast %93 : f32 to vector<8x128xf32>
      %95 = arith.mulf %92, %94 : vector<8x128xf32>
      %96 = arith.addf %79, %95 : vector<8x128xf32>
      %c17 = arith.constant 17 : index
      %97 = memref.load %arg3[%c17] : memref<60xf32, #tpu.memory_space<smem>>
      %98 = vector.broadcast %97 : f32 to vector<8x128xf32>
      %99 = arith.mulf %92, %98 : vector<8x128xf32>
      %100 = arith.addf %83, %99 : vector<8x128xf32>
      %c18 = arith.constant 18 : index
      %101 = memref.load %arg3[%c18] : memref<60xf32, #tpu.memory_space<smem>>
      %102 = vector.broadcast %101 : f32 to vector<8x128xf32>
      %103 = arith.mulf %92, %102 : vector<8x128xf32>
      %104 = arith.addf %87, %103 : vector<8x128xf32>
      %c19 = arith.constant 19 : index
      %105 = memref.load %arg3[%c19] : memref<60xf32, #tpu.memory_space<smem>>
      %106 = vector.broadcast %105 : f32 to vector<8x128xf32>
      %107 = arith.mulf %92, %106 : vector<8x128xf32>
      %108 = arith.addf %91, %107 : vector<8x128xf32>
      %c40 = arith.constant 40 : index
      %c0_16 = arith.constant 0 : index
      %109 = vector.load %arg2[%c40, %c0_16] : memref<120x128xf32, #tpu.memory_space<vmem>>, vector<8x128xf32>
      %c20 = arith.constant 20 : index
      %110 = memref.load %arg3[%c20] : memref<60xf32, #tpu.memory_space<smem>>
      %111 = vector.broadcast %110 : f32 to vector<8x128xf32>
      %112 = arith.mulf %109, %111 : vector<8x128xf32>
      %113 = arith.addf %96, %112 : vector<8x128xf32>
      %c21 = arith.constant 21 : index
      %114 = memref.load %arg3[%c21] : memref<60xf32, #tpu.memory_space<smem>>
      %115 = vector.broadcast %114 : f32 to vector<8x128xf32>
      %116 = arith.mulf %109, %115 : vector<8x128xf32>
      %117 = arith.addf %100, %116 : vector<8x128xf32>
      %c22 = arith.constant 22 : index
      %118 = memref.load %arg3[%c22] : memref<60xf32, #tpu.memory_space<smem>>
      %119 = vector.broadcast %118 : f32 to vector<8x128xf32>
      %120 = arith.mulf %109, %119 : vector<8x128xf32>
      %121 = arith.addf %104, %120 : vector<8x128xf32>
      %c23 = arith.constant 23 : index
      %122 = memref.load %arg3[%c23] : memref<60xf32, #tpu.memory_space<smem>>
      %123 = vector.broadcast %122 : f32 to vector<8x128xf32>
      %124 = arith.mulf %109, %123 : vector<8x128xf32>
      %125 = arith.addf %108, %124 : vector<8x128xf32>
      %c48 = arith.constant 48 : index
      %c0_17 = arith.constant 0 : index
      %126 = vector.load %arg2[%c48, %c0_17] : memref<120x128xf32, #tpu.memory_space<vmem>>, vector<8x128xf32>
      %c24_18 = arith.constant 24 : index
      %127 = memref.load %arg3[%c24_18] : memref<60xf32, #tpu.memory_space<smem>>
      %128 = vector.broadcast %127 : f32 to vector<8x128xf32>
      %129 = arith.mulf %126, %128 : vector<8x128xf32>
      %130 = arith.addf %113, %129 : vector<8x128xf32>
      %c25 = arith.constant 25 : index
      %131 = memref.load %arg3[%c25] : memref<60xf32, #tpu.memory_space<smem>>
      %132 = vector.broadcast %131 : f32 to vector<8x128xf32>
      %133 = arith.mulf %126, %132 : vector<8x128xf32>
      %134 = arith.addf %117, %133 : vector<8x128xf32>
      %c26 = arith.constant 26 : index
      %135 = memref.load %arg3[%c26] : memref<60xf32, #tpu.memory_space<smem>>
      %136 = vector.broadcast %135 : f32 to vector<8x128xf32>
      %137 = arith.mulf %126, %136 : vector<8x128xf32>
      %138 = arith.addf %121, %137 : vector<8x128xf32>
      %c27 = arith.constant 27 : index
      %139 = memref.load %arg3[%c27] : memref<60xf32, #tpu.memory_space<smem>>
      %140 = vector.broadcast %139 : f32 to vector<8x128xf32>
      %141 = arith.mulf %126, %140 : vector<8x128xf32>
      %142 = arith.addf %125, %141 : vector<8x128xf32>
      %c56 = arith.constant 56 : index
      %c0_19 = arith.constant 0 : index
      %143 = vector.load %arg2[%c56, %c0_19] : memref<120x128xf32, #tpu.memory_space<vmem>>, vector<8x128xf32>
      %c28 = arith.constant 28 : index
      %144 = memref.load %arg3[%c28] : memref<60xf32, #tpu.memory_space<smem>>
      %145 = vector.broadcast %144 : f32 to vector<8x128xf32>
      %146 = arith.mulf %143, %145 : vector<8x128xf32>
      %147 = arith.addf %130, %146 : vector<8x128xf32>
      %c29 = arith.constant 29 : index
      %148 = memref.load %arg3[%c29] : memref<60xf32, #tpu.memory_space<smem>>
      %149 = vector.broadcast %148 : f32 to vector<8x128xf32>
      %150 = arith.mulf %143, %149 : vector<8x128xf32>
      %151 = arith.addf %134, %150 : vector<8x128xf32>
      %c30 = arith.constant 30 : index
      %152 = memref.load %arg3[%c30] : memref<60xf32, #tpu.memory_space<smem>>
      %153 = vector.broadcast %152 : f32 to vector<8x128xf32>
      %154 = arith.mulf %143, %153 : vector<8x128xf32>
      %155 = arith.addf %138, %154 : vector<8x128xf32>
      %c31 = arith.constant 31 : index
      %156 = memref.load %arg3[%c31] : memref<60xf32, #tpu.memory_space<smem>>
      %157 = vector.broadcast %156 : f32 to vector<8x128xf32>
      %158 = arith.mulf %143, %157 : vector<8x128xf32>
      %159 = arith.addf %142, %158 : vector<8x128xf32>
      %c64 = arith.constant 64 : index
      %c0_20 = arith.constant 0 : index
      %160 = vector.load %arg2[%c64, %c0_20] : memref<120x128xf32, #tpu.memory_space<vmem>>, vector<8x128xf32>
      %c32_21 = arith.constant 32 : index
      %161 = memref.load %arg3[%c32_21] : memref<60xf32, #tpu.memory_space<smem>>
      %162 = vector.broadcast %161 : f32 to vector<8x128xf32>
      %163 = arith.mulf %160, %162 : vector<8x128xf32>
      %164 = arith.addf %147, %163 : vector<8x128xf32>
      %c33 = arith.constant 33 : index
      %165 = memref.load %arg3[%c33] : memref<60xf32, #tpu.memory_space<smem>>
      %166 = vector.broadcast %165 : f32 to vector<8x128xf32>
      %167 = arith.mulf %160, %166 : vector<8x128xf32>
      %168 = arith.addf %151, %167 : vector<8x128xf32>
      %c34 = arith.constant 34 : index
      %169 = memref.load %arg3[%c34] : memref<60xf32, #tpu.memory_space<smem>>
      %170 = vector.broadcast %169 : f32 to vector<8x128xf32>
      %171 = arith.mulf %160, %170 : vector<8x128xf32>
      %172 = arith.addf %155, %171 : vector<8x128xf32>
      %c35 = arith.constant 35 : index
      %173 = memref.load %arg3[%c35] : memref<60xf32, #tpu.memory_space<smem>>
      %174 = vector.broadcast %173 : f32 to vector<8x128xf32>
      %175 = arith.mulf %160, %174 : vector<8x128xf32>
      %176 = arith.addf %159, %175 : vector<8x128xf32>
      %c72 = arith.constant 72 : index
      %c0_22 = arith.constant 0 : index
      %177 = vector.load %arg2[%c72, %c0_22] : memref<120x128xf32, #tpu.memory_space<vmem>>, vector<8x128xf32>
      %c36 = arith.constant 36 : index
      %178 = memref.load %arg3[%c36] : memref<60xf32, #tpu.memory_space<smem>>
      %179 = vector.broadcast %178 : f32 to vector<8x128xf32>
      %180 = arith.mulf %177, %179 : vector<8x128xf32>
      %181 = arith.addf %164, %180 : vector<8x128xf32>
      %c37 = arith.constant 37 : index
      %182 = memref.load %arg3[%c37] : memref<60xf32, #tpu.memory_space<smem>>
      %183 = vector.broadcast %182 : f32 to vector<8x128xf32>
      %184 = arith.mulf %177, %183 : vector<8x128xf32>
      %185 = arith.addf %168, %184 : vector<8x128xf32>
      %c38 = arith.constant 38 : index
      %186 = memref.load %arg3[%c38] : memref<60xf32, #tpu.memory_space<smem>>
      %187 = vector.broadcast %186 : f32 to vector<8x128xf32>
      %188 = arith.mulf %177, %187 : vector<8x128xf32>
      %189 = arith.addf %172, %188 : vector<8x128xf32>
      %c39 = arith.constant 39 : index
      %190 = memref.load %arg3[%c39] : memref<60xf32, #tpu.memory_space<smem>>
      %191 = vector.broadcast %190 : f32 to vector<8x128xf32>
      %192 = arith.mulf %177, %191 : vector<8x128xf32>
      %193 = arith.addf %176, %192 : vector<8x128xf32>
      %c80 = arith.constant 80 : index
      %c0_23 = arith.constant 0 : index
      %194 = vector.load %arg2[%c80, %c0_23] : memref<120x128xf32, #tpu.memory_space<vmem>>, vector<8x128xf32>
      %c40_24 = arith.constant 40 : index
      %195 = memref.load %arg3[%c40_24] : memref<60xf32, #tpu.memory_space<smem>>
      %196 = vector.broadcast %195 : f32 to vector<8x128xf32>
      %197 = arith.mulf %194, %196 : vector<8x128xf32>
      %198 = arith.addf %181, %197 : vector<8x128xf32>
      %c41 = arith.constant 41 : index
      %199 = memref.load %arg3[%c41] : memref<60xf32, #tpu.memory_space<smem>>
      %200 = vector.broadcast %199 : f32 to vector<8x128xf32>
      %201 = arith.mulf %194, %200 : vector<8x128xf32>
      %202 = arith.addf %185, %201 : vector<8x128xf32>
      %c42 = arith.constant 42 : index
      %203 = memref.load %arg3[%c42] : memref<60xf32, #tpu.memory_space<smem>>
      %204 = vector.broadcast %203 : f32 to vector<8x128xf32>
      %205 = arith.mulf %194, %204 : vector<8x128xf32>
      %206 = arith.addf %189, %205 : vector<8x128xf32>
      %c43 = arith.constant 43 : index
      %207 = memref.load %arg3[%c43] : memref<60xf32, #tpu.memory_space<smem>>
      %208 = vector.broadcast %207 : f32 to vector<8x128xf32>
      %209 = arith.mulf %194, %208 : vector<8x128xf32>
      %210 = arith.addf %193, %209 : vector<8x128xf32>
      %c88 = arith.constant 88 : index
      %c0_25 = arith.constant 0 : index
      %211 = vector.load %arg2[%c88, %c0_25] : memref<120x128xf32, #tpu.memory_space<vmem>>, vector<8x128xf32>
      %c44 = arith.constant 44 : index
      %212 = memref.load %arg3[%c44] : memref<60xf32, #tpu.memory_space<smem>>
      %213 = vector.broadcast %212 : f32 to vector<8x128xf32>
      %214 = arith.mulf %211, %213 : vector<8x128xf32>
      %215 = arith.addf %198, %214 : vector<8x128xf32>
      %c45 = arith.constant 45 : index
      %216 = memref.load %arg3[%c45] : memref<60xf32, #tpu.memory_space<smem>>
      %217 = vector.broadcast %216 : f32 to vector<8x128xf32>
      %218 = arith.mulf %211, %217 : vector<8x128xf32>
      %219 = arith.addf %202, %218 : vector<8x128xf32>
      %c46 = arith.constant 46 : index
      %220 = memref.load %arg3[%c46] : memref<60xf32, #tpu.memory_space<smem>>
      %221 = vector.broadcast %220 : f32 to vector<8x128xf32>
      %222 = arith.mulf %211, %221 : vector<8x128xf32>
      %223 = arith.addf %206, %222 : vector<8x128xf32>
      %c47 = arith.constant 47 : index
      %224 = memref.load %arg3[%c47] : memref<60xf32, #tpu.memory_space<smem>>
      %225 = vector.broadcast %224 : f32 to vector<8x128xf32>
      %226 = arith.mulf %211, %225 : vector<8x128xf32>
      %227 = arith.addf %210, %226 : vector<8x128xf32>
      %c96 = arith.constant 96 : index
      %c0_26 = arith.constant 0 : index
      %228 = vector.load %arg2[%c96, %c0_26] : memref<120x128xf32, #tpu.memory_space<vmem>>, vector<8x128xf32>
      %c48_27 = arith.constant 48 : index
      %229 = memref.load %arg3[%c48_27] : memref<60xf32, #tpu.memory_space<smem>>
      %230 = vector.broadcast %229 : f32 to vector<8x128xf32>
      %231 = arith.mulf %228, %230 : vector<8x128xf32>
      %232 = arith.addf %215, %231 : vector<8x128xf32>
      %c49 = arith.constant 49 : index
      %233 = memref.load %arg3[%c49] : memref<60xf32, #tpu.memory_space<smem>>
      %234 = vector.broadcast %233 : f32 to vector<8x128xf32>
      %235 = arith.mulf %228, %234 : vector<8x128xf32>
      %236 = arith.addf %219, %235 : vector<8x128xf32>
      %c50 = arith.constant 50 : index
      %237 = memref.load %arg3[%c50] : memref<60xf32, #tpu.memory_space<smem>>
      %238 = vector.broadcast %237 : f32 to vector<8x128xf32>
      %239 = arith.mulf %228, %238 : vector<8x128xf32>
      %240 = arith.addf %223, %239 : vector<8x128xf32>
      %c51 = arith.constant 51 : index
      %241 = memref.load %arg3[%c51] : memref<60xf32, #tpu.memory_space<smem>>
      %242 = vector.broadcast %241 : f32 to vector<8x128xf32>
      %243 = arith.mulf %228, %242 : vector<8x128xf32>
      %244 = arith.addf %227, %243 : vector<8x128xf32>
      %c104 = arith.constant 104 : index
      %c0_28 = arith.constant 0 : index
      %245 = vector.load %arg2[%c104, %c0_28] : memref<120x128xf32, #tpu.memory_space<vmem>>, vector<8x128xf32>
      %c52 = arith.constant 52 : index
      %246 = memref.load %arg3[%c52] : memref<60xf32, #tpu.memory_space<smem>>
      %247 = vector.broadcast %246 : f32 to vector<8x128xf32>
      %248 = arith.mulf %245, %247 : vector<8x128xf32>
      %249 = arith.addf %232, %248 : vector<8x128xf32>
      %c53 = arith.constant 53 : index
      %250 = memref.load %arg3[%c53] : memref<60xf32, #tpu.memory_space<smem>>
      %251 = vector.broadcast %250 : f32 to vector<8x128xf32>
      %252 = arith.mulf %245, %251 : vector<8x128xf32>
      %253 = arith.addf %236, %252 : vector<8x128xf32>
      %c54 = arith.constant 54 : index
      %254 = memref.load %arg3[%c54] : memref<60xf32, #tpu.memory_space<smem>>
      %255 = vector.broadcast %254 : f32 to vector<8x128xf32>
      %256 = arith.mulf %245, %255 : vector<8x128xf32>
      %257 = arith.addf %240, %256 : vector<8x128xf32>
      %c55 = arith.constant 55 : index
      %258 = memref.load %arg3[%c55] : memref<60xf32, #tpu.memory_space<smem>>
      %259 = vector.broadcast %258 : f32 to vector<8x128xf32>
      %260 = arith.mulf %245, %259 : vector<8x128xf32>
      %261 = arith.addf %244, %260 : vector<8x128xf32>
      %c112 = arith.constant 112 : index
      %c0_29 = arith.constant 0 : index
      %262 = vector.load %arg2[%c112, %c0_29] : memref<120x128xf32, #tpu.memory_space<vmem>>, vector<8x128xf32>
      %c56_30 = arith.constant 56 : index
      %263 = memref.load %arg3[%c56_30] : memref<60xf32, #tpu.memory_space<smem>>
      %264 = vector.broadcast %263 : f32 to vector<8x128xf32>
      %265 = arith.mulf %262, %264 : vector<8x128xf32>
      %266 = arith.addf %249, %265 : vector<8x128xf32>
      %c57 = arith.constant 57 : index
      %267 = memref.load %arg3[%c57] : memref<60xf32, #tpu.memory_space<smem>>
      %268 = vector.broadcast %267 : f32 to vector<8x128xf32>
      %269 = arith.mulf %262, %268 : vector<8x128xf32>
      %270 = arith.addf %253, %269 : vector<8x128xf32>
      %c58 = arith.constant 58 : index
      %271 = memref.load %arg3[%c58] : memref<60xf32, #tpu.memory_space<smem>>
      %272 = vector.broadcast %271 : f32 to vector<8x128xf32>
      %273 = arith.mulf %262, %272 : vector<8x128xf32>
      %274 = arith.addf %257, %273 : vector<8x128xf32>
      %c59 = arith.constant 59 : index
      %275 = memref.load %arg3[%c59] : memref<60xf32, #tpu.memory_space<smem>>
      %276 = vector.broadcast %275 : f32 to vector<8x128xf32>
      %277 = arith.mulf %262, %276 : vector<8x128xf32>
      %278 = arith.addf %261, %277 : vector<8x128xf32>
      %c0_31 = arith.constant 0 : index
      %279 = memref.load %arg4[%c0_31] : memref<4xf32, #tpu.memory_space<smem>>
      %280 = vector.broadcast %279 : f32 to vector<8x128xf32>
      %281 = arith.addf %266, %280 : vector<8x128xf32>
      %c0_32 = arith.constant 0 : index
      %282 = arith.index_cast %1 : i32 to index
      %283 = vector.load %arg14[%c0_32, %282] : memref<64x128xf32, #tpu.memory_space<vmem>>, vector<8x128xf32>
      tpu.vector_store %arg14[%c0_32, %282], %281 {strides = array<i32>} : memref<64x128xf32, #tpu.memory_space<vmem>>, vector<8x128xf32>,
      %c0_33 = arith.constant 0 : index
      %284 = memref.load %arg15[%c0_33] : memref<4xf32, #tpu.memory_space<smem>>
      %285 = arith.mulf %281, %27 : vector<8x128xf32>
      %286 = vector.shape_cast %285 : vector<8x128xf32> to vector<1x8x128xf32>
      %cst = arith.constant dense<0.000000e+00> : vector<1xf32>
      %287 = vector.multi_reduction <add>, %286, %cst [1, 2] : vector<1x8x128xf32> to vector<1xf32>
      %288 = vector.shape_cast %287 : vector<1xf32> to vector<1x1x1xf32>
      %289 = vector.extract %288[0, 0, 0] : f32 from vector<1x1x1xf32>
      %290 = arith.addf %284, %289 : f32
      %c0_34 = arith.constant 0 : index
      %291 = memref.load %arg15[%c0_34] : memref<4xf32, #tpu.memory_space<smem>>
      memref.store %290, %arg15[%c0_34] : memref<4xf32, #tpu.memory_space<smem>>
      %c0_35 = arith.constant 0 : index
      %292 = memref.load %arg16[%c0_35] : memref<4xf32, #tpu.memory_space<smem>>
      %293 = arith.mulf %281, %281 : vector<8x128xf32>
      %294 = arith.mulf %293, %27 : vector<8x128xf32>
      %295 = vector.shape_cast %294 : vector<8x128xf32> to vector<1x8x128xf32>
      %cst_36 = arith.constant dense<0.000000e+00> : vector<1xf32>
      %296 = vector.multi_reduction <add>, %295, %cst_36 [1, 2] : vector<1x8x128xf32> to vector<1xf32>
      %297 = vector.shape_cast %296 : vector<1xf32> to vector<1x1x1xf32>
      %298 = vector.extract %297[0, 0, 0] : f32 from vector<1x1x1xf32>
      %299 = arith.addf %292, %298 : f32
      %c0_37 = arith.constant 0 : index
      %300 = memref.load %arg16[%c0_37] : memref<4xf32, #tpu.memory_space<smem>>
      memref.store %299, %arg16[%c0_37] : memref<4xf32, #tpu.memory_space<smem>>
      %c1_38 = arith.constant 1 : index
      %301 = memref.load %arg4[%c1_38] : memref<4xf32, #tpu.memory_space<smem>>
      %302 = vector.broadcast %301 : f32 to vector<8x128xf32>
      %303 = arith.addf %270, %302 : vector<8x128xf32>
      %c8_39 = arith.constant 8 : index
      %304 = arith.index_cast %1 : i32 to index
      %305 = vector.load %arg14[%c8_39, %304] : memref<64x128xf32, #tpu.memory_space<vmem>>, vector<8x128xf32>
      tpu.vector_store %arg14[%c8_39, %304], %303 {strides = array<i32>} : memref<64x128xf32, #tpu.memory_space<vmem>>, vector<8x128xf32>,
      %c1_40 = arith.constant 1 : index
      %306 = memref.load %arg15[%c1_40] : memref<4xf32, #tpu.memory_space<smem>>
      %307 = arith.mulf %303, %27 : vector<8x128xf32>
      %308 = vector.shape_cast %307 : vector<8x128xf32> to vector<1x8x128xf32>
      %cst_41 = arith.constant dense<0.000000e+00> : vector<1xf32>
      %309 = vector.multi_reduction <add>, %308, %cst_41 [1, 2] : vector<1x8x128xf32> to vector<1xf32>
      %310 = vector.shape_cast %309 : vector<1xf32> to vector<1x1x1xf32>
      %311 = vector.extract %310[0, 0, 0] : f32 from vector<1x1x1xf32>
      %312 = arith.addf %306, %311 : f32
      %c1_42 = arith.constant 1 : index
      %313 = memref.load %arg15[%c1_42] : memref<4xf32, #tpu.memory_space<smem>>
      memref.store %312, %arg15[%c1_42] : memref<4xf32, #tpu.memory_space<smem>>
      %c1_43 = arith.constant 1 : index
      %314 = memref.load %arg16[%c1_43] : memref<4xf32, #tpu.memory_space<smem>>
      %315 = arith.mulf %303, %303 : vector<8x128xf32>
      %316 = arith.mulf %315, %27 : vector<8x128xf32>
      %317 = vector.shape_cast %316 : vector<8x128xf32> to vector<1x8x128xf32>
      %cst_44 = arith.constant dense<0.000000e+00> : vector<1xf32>
      %318 = vector.multi_reduction <add>, %317, %cst_44 [1, 2] : vector<1x8x128xf32> to vector<1xf32>
      %319 = vector.shape_cast %318 : vector<1xf32> to vector<1x1x1xf32>
      %320 = vector.extract %319[0, 0, 0] : f32 from vector<1x1x1xf32>
      %321 = arith.addf %314, %320 : f32
      %c1_45 = arith.constant 1 : index
      %322 = memref.load %arg16[%c1_45] : memref<4xf32, #tpu.memory_space<smem>>
      memref.store %321, %arg16[%c1_45] : memref<4xf32, #tpu.memory_space<smem>>
      %c2_46 = arith.constant 2 : index
      %323 = memref.load %arg4[%c2_46] : memref<4xf32, #tpu.memory_space<smem>>
      %324 = vector.broadcast %323 : f32 to vector<8x128xf32>
      %325 = arith.addf %274, %324 : vector<8x128xf32>
      %c16_47 = arith.constant 16 : index
      %326 = arith.index_cast %1 : i32 to index
      %327 = vector.load %arg14[%c16_47, %326] : memref<64x128xf32, #tpu.memory_space<vmem>>, vector<8x128xf32>
      tpu.vector_store %arg14[%c16_47, %326], %325 {strides = array<i32>} : memref<64x128xf32, #tpu.memory_space<vmem>>, vector<8x128xf32>,
      %c2_48 = arith.constant 2 : index
      %328 = memref.load %arg15[%c2_48] : memref<4xf32, #tpu.memory_space<smem>>
      %329 = arith.mulf %325, %27 : vector<8x128xf32>
      %330 = vector.shape_cast %329 : vector<8x128xf32> to vector<1x8x128xf32>
      %cst_49 = arith.constant dense<0.000000e+00> : vector<1xf32>
      %331 = vector.multi_reduction <add>, %330, %cst_49 [1, 2] : vector<1x8x128xf32> to vector<1xf32>
      %332 = vector.shape_cast %331 : vector<1xf32> to vector<1x1x1xf32>
      %333 = vector.extract %332[0, 0, 0] : f32 from vector<1x1x1xf32>
      %334 = arith.addf %328, %333 : f32
      %c2_50 = arith.constant 2 : index
      %335 = memref.load %arg15[%c2_50] : memref<4xf32, #tpu.memory_space<smem>>
      memref.store %334, %arg15[%c2_50] : memref<4xf32, #tpu.memory_space<smem>>
      %c2_51 = arith.constant 2 : index
      %336 = memref.load %arg16[%c2_51] : memref<4xf32, #tpu.memory_space<smem>>
      %337 = arith.mulf %325, %325 : vector<8x128xf32>
      %338 = arith.mulf %337, %27 : vector<8x128xf32>
      %339 = vector.shape_cast %338 : vector<8x128xf32> to vector<1x8x128xf32>
      %cst_52 = arith.constant dense<0.000000e+00> : vector<1xf32>
      %340 = vector.multi_reduction <add>, %339, %cst_52 [1, 2] : vector<1x8x128xf32> to vector<1xf32>
      %341 = vector.shape_cast %340 : vector<1xf32> to vector<1x1x1xf32>
      %342 = vector.extract %341[0, 0, 0] : f32 from vector<1x1x1xf32>
      %343 = arith.addf %336, %342 : f32
      %c2_53 = arith.constant 2 : index
      %344 = memref.load %arg16[%c2_53] : memref<4xf32, #tpu.memory_space<smem>>
      memref.store %343, %arg16[%c2_53] : memref<4xf32, #tpu.memory_space<smem>>
      %c3_54 = arith.constant 3 : index
      %345 = memref.load %arg4[%c3_54] : memref<4xf32, #tpu.memory_space<smem>>
      %346 = vector.broadcast %345 : f32 to vector<8x128xf32>
      %347 = arith.addf %278, %346 : vector<8x128xf32>
      %c24_55 = arith.constant 24 : index
      %348 = arith.index_cast %1 : i32 to index
      %349 = vector.load %arg14[%c24_55, %348] : memref<64x128xf32, #tpu.memory_space<vmem>>, vector<8x128xf32>
      tpu.vector_store %arg14[%c24_55, %348], %347 {strides = array<i32>} : memref<64x128xf32, #tpu.memory_space<vmem>>, vector<8x128xf32>,
      %c3_56 = arith.constant 3 : index
      %350 = memref.load %arg15[%c3_56] : memref<4xf32, #tpu.memory_space<smem>>
      %351 = arith.mulf %347, %27 : vector<8x128xf32>
      %352 = vector.shape_cast %351 : vector<8x128xf32> to vector<1x8x128xf32>
      %cst_57 = arith.constant dense<0.000000e+00> : vector<1xf32>
      %353 = vector.multi_reduction <add>, %352, %cst_57 [1, 2] : vector<1x8x128xf32> to vector<1xf32>
      %354 = vector.shape_cast %353 : vector<1xf32> to vector<1x1x1xf32>
      %355 = vector.extract %354[0, 0, 0] : f32 from vector<1x1x1xf32>
      %356 = arith.addf %350, %355 : f32
      %c3_58 = arith.constant 3 : index
      %357 = memref.load %arg15[%c3_58] : memref<4xf32, #tpu.memory_space<smem>>
      memref.store %356, %arg15[%c3_58] : memref<4xf32, #tpu.memory_space<smem>>
      %c3_59 = arith.constant 3 : index
      %358 = memref.load %arg16[%c3_59] : memref<4xf32, #tpu.memory_space<smem>>
      %359 = arith.mulf %347, %347 : vector<8x128xf32>
      %360 = arith.mulf %359, %27 : vector<8x128xf32>
      %361 = vector.shape_cast %360 : vector<8x128xf32> to vector<1x8x128xf32>
      %cst_60 = arith.constant dense<0.000000e+00> : vector<1xf32>
      %362 = vector.multi_reduction <add>, %361, %cst_60 [1, 2] : vector<1x8x128xf32> to vector<1xf32>
      %363 = vector.shape_cast %362 : vector<1xf32> to vector<1x1x1xf32>
      %364 = vector.extract %363[0, 0, 0] : f32 from vector<1x1x1xf32>
      %365 = arith.addf %358, %364 : f32
      %c3_61 = arith.constant 3 : index
      %366 = memref.load %arg16[%c3_61] : memref<4xf32, #tpu.memory_space<smem>>
      memref.store %365, %arg16[%c3_61] : memref<4xf32, #tpu.memory_space<smem>>
    } else {
    }
    %c1_i32 = arith.constant 1 : i32
    %10 = arith.cmpi eq, %arg0, %c1_i32 : i32
    %11 = arith.extui %10 : i1 to i32
    %c0_i32_4 = arith.constant 0 : i32
    %12 = arith.cmpi ne, %11, %c0_i32_4 : i32
    scf.if %12 {
      %16 = tpu.iota {dimensions = array<i32: 0>} : vector<8x128xi32>
      %17 = tpu.iota {dimensions = array<i32: 1>} : vector<8x128xi32>
      %c128_i32_6 = arith.constant 128 : i32
      %18 = arith.muli %arg1, %c128_i32_6 : i32
      %19 = vector.broadcast %18 : i32 to vector<8x128xi32>
      %20 = arith.addi %17, %19 : vector<8x128xi32>
      %c8_i32 = arith.constant 8 : i32
      %21 = vector.broadcast %c8_i32 : i32 to vector<8x128xi32>
      %22 = arith.muli %20, %21 : vector<8x128xi32>
      %23 = arith.addi %22, %16 : vector<8x128xi32>
      %c8_i32_7 = arith.constant 8 : i32
      %24 = vector.broadcast %c8_i32_7 : i32 to vector<8x128xi32>
      %25 = arith.cmpi slt, %23, %24 : vector<8x128xi32>
      %26 = arith.extui %25 : vector<8x128xi1> to vector<8x128xi32>
      %27 = arith.sitofp %26 : vector<8x128xi32> to vector<8x128xf32>
      %c0 = arith.constant 0 : index
      %28 = memref.load %arg15[%c0] : memref<4xf32, #tpu.memory_space<smem>>
      %cst = arith.constant 1.250000e-01 : f32
      %29 = arith.mulf %28, %cst : f32
      %c0_8 = arith.constant 0 : index
      %30 = memref.load %arg16[%c0_8] : memref<4xf32, #tpu.memory_space<smem>>
      %cst_9 = arith.constant 1.250000e-01 : f32
      %31 = arith.mulf %30, %cst_9 : f32
      %32 = arith.mulf %29, %29 : f32
      %33 = arith.subf %31, %32 : f32
      %c0_10 = arith.constant 0 : index
      %34 = arith.index_cast %1 : i32 to index
      %35 = vector.load %arg14[%c0_10, %34] : memref<64x128xf32, #tpu.memory_space<vmem>>, vector<8x128xf32>
      %cst_11 = arith.constant 9.99999974E-6 : f32
      %36 = arith.addf %33, %cst_11 : f32
      %37 = vector.broadcast %36 : f32 to vector<8x128xf32>
      %38 = math.rsqrt %37 : vector<8x128xf32>
      %39 = vector.broadcast %29 : f32 to vector<8x128xf32>
      %40 = arith.subf %35, %39 : vector<8x128xf32>
      %41 = arith.mulf %40, %38 : vector<8x128xf32>
      %c0_12 = arith.constant 0 : index
      %42 = memref.load %arg5[%c0_12] : memref<4xf32, #tpu.memory_space<smem>>
      %43 = vector.broadcast %42 : f32 to vector<8x128xf32>
      %44 = arith.mulf %41, %43 : vector<8x128xf32>
      %c0_13 = arith.constant 0 : index
      %45 = memref.load %arg6[%c0_13] : memref<4xf32, #tpu.memory_space<smem>>
      %46 = vector.broadcast %45 : f32 to vector<8x128xf32>
      %47 = arith.addf %44, %46 : vector<8x128xf32>
      %cst_14 = arith.constant 0.000000e+00 : f32
      %48 = vector.broadcast %cst_14 : f32 to vector<8x128xf32>
      %49 = arith.cmpf ogt, %47, %48 : vector<8x128xf32>
      %cst_15 = arith.constant 2.000000e-01 : f32
      %50 = vector.broadcast %cst_15 : f32 to vector<8x128xf32>
      %51 = arith.mulf %50, %47 : vector<8x128xf32>
      %52 = arith.select %49, %47, %51 : vector<8x128xi1>, vector<8x128xf32>
      %c1 = arith.constant 1 : index
      %53 = memref.load %arg15[%c1] : memref<4xf32, #tpu.memory_space<smem>>
      %cst_16 = arith.constant 1.250000e-01 : f32
      %54 = arith.mulf %53, %cst_16 : f32
      %c1_17 = arith.constant 1 : index
      %55 = memref.load %arg16[%c1_17] : memref<4xf32, #tpu.memory_space<smem>>
      %cst_18 = arith.constant 1.250000e-01 : f32
      %56 = arith.mulf %55, %cst_18 : f32
      %57 = arith.mulf %54, %54 : f32
      %58 = arith.subf %56, %57 : f32
      %c8 = arith.constant 8 : index
      %59 = arith.index_cast %1 : i32 to index
      %60 = vector.load %arg14[%c8, %59] : memref<64x128xf32, #tpu.memory_space<vmem>>, vector<8x128xf32>
      %cst_19 = arith.constant 9.99999974E-6 : f32
      %61 = arith.addf %58, %cst_19 : f32
      %62 = vector.broadcast %61 : f32 to vector<8x128xf32>
      %63 = math.rsqrt %62 : vector<8x128xf32>
      %64 = vector.broadcast %54 : f32 to vector<8x128xf32>
      %65 = arith.subf %60, %64 : vector<8x128xf32>
      %66 = arith.mulf %65, %63 : vector<8x128xf32>
      %c1_20 = arith.constant 1 : index
      %67 = memref.load %arg5[%c1_20] : memref<4xf32, #tpu.memory_space<smem>>
      %68 = vector.broadcast %67 : f32 to vector<8x128xf32>
      %69 = arith.mulf %66, %68 : vector<8x128xf32>
      %c1_21 = arith.constant 1 : index
      %70 = memref.load %arg6[%c1_21] : memref<4xf32, #tpu.memory_space<smem>>
      %71 = vector.broadcast %70 : f32 to vector<8x128xf32>
      %72 = arith.addf %69, %71 : vector<8x128xf32>
      %cst_22 = arith.constant 0.000000e+00 : f32
      %73 = vector.broadcast %cst_22 : f32 to vector<8x128xf32>
      %74 = arith.cmpf ogt, %72, %73 : vector<8x128xf32>
      %cst_23 = arith.constant 2.000000e-01 : f32
      %75 = vector.broadcast %cst_23 : f32 to vector<8x128xf32>
      %76 = arith.mulf %75, %72 : vector<8x128xf32>
      %77 = arith.select %74, %72, %76 : vector<8x128xi1>, vector<8x128xf32>
      %c2 = arith.constant 2 : index
      %78 = memref.load %arg15[%c2] : memref<4xf32, #tpu.memory_space<smem>>
      %cst_24 = arith.constant 1.250000e-01 : f32
      %79 = arith.mulf %78, %cst_24 : f32
      %c2_25 = arith.constant 2 : index
      %80 = memref.load %arg16[%c2_25] : memref<4xf32, #tpu.memory_space<smem>>
      %cst_26 = arith.constant 1.250000e-01 : f32
      %81 = arith.mulf %80, %cst_26 : f32
      %82 = arith.mulf %79, %79 : f32
      %83 = arith.subf %81, %82 : f32
      %c16 = arith.constant 16 : index
      %84 = arith.index_cast %1 : i32 to index
      %85 = vector.load %arg14[%c16, %84] : memref<64x128xf32, #tpu.memory_space<vmem>>, vector<8x128xf32>
      %cst_27 = arith.constant 9.99999974E-6 : f32
      %86 = arith.addf %83, %cst_27 : f32
      %87 = vector.broadcast %86 : f32 to vector<8x128xf32>
      %88 = math.rsqrt %87 : vector<8x128xf32>
      %89 = vector.broadcast %79 : f32 to vector<8x128xf32>
      %90 = arith.subf %85, %89 : vector<8x128xf32>
      %91 = arith.mulf %90, %88 : vector<8x128xf32>
      %c2_28 = arith.constant 2 : index
      %92 = memref.load %arg5[%c2_28] : memref<4xf32, #tpu.memory_space<smem>>
      %93 = vector.broadcast %92 : f32 to vector<8x128xf32>
      %94 = arith.mulf %91, %93 : vector<8x128xf32>
      %c2_29 = arith.constant 2 : index
      %95 = memref.load %arg6[%c2_29] : memref<4xf32, #tpu.memory_space<smem>>
      %96 = vector.broadcast %95 : f32 to vector<8x128xf32>
      %97 = arith.addf %94, %96 : vector<8x128xf32>
      %cst_30 = arith.constant 0.000000e+00 : f32
      %98 = vector.broadcast %cst_30 : f32 to vector<8x128xf32>
      %99 = arith.cmpf ogt, %97, %98 : vector<8x128xf32>
      %cst_31 = arith.constant 2.000000e-01 : f32
      %100 = vector.broadcast %cst_31 : f32 to vector<8x128xf32>
      %101 = arith.mulf %100, %97 : vector<8x128xf32>
      %102 = arith.select %99, %97, %101 : vector<8x128xi1>, vector<8x128xf32>
      %c3 = arith.constant 3 : index
      %103 = memref.load %arg15[%c3] : memref<4xf32, #tpu.memory_space<smem>>
      %cst_32 = arith.constant 1.250000e-01 : f32
      %104 = arith.mulf %103, %cst_32 : f32
      %c3_33 = arith.constant 3 : index
      %105 = memref.load %arg16[%c3_33] : memref<4xf32, #tpu.memory_space<smem>>
      %cst_34 = arith.constant 1.250000e-01 : f32
      %106 = arith.mulf %105, %cst_34 : f32
      %107 = arith.mulf %104, %104 : f32
      %108 = arith.subf %106, %107 : f32
      %c24 = arith.constant 24 : index
      %109 = arith.index_cast %1 : i32 to index
      %110 = vector.load %arg14[%c24, %109] : memref<64x128xf32, #tpu.memory_space<vmem>>, vector<8x128xf32>
      %cst_35 = arith.constant 9.99999974E-6 : f32
      %111 = arith.addf %108, %cst_35 : f32
      %112 = vector.broadcast %111 : f32 to vector<8x128xf32>
      %113 = math.rsqrt %112 : vector<8x128xf32>
      %114 = vector.broadcast %104 : f32 to vector<8x128xf32>
      %115 = arith.subf %110, %114 : vector<8x128xf32>
      %116 = arith.mulf %115, %113 : vector<8x128xf32>
      %c3_36 = arith.constant 3 : index
      %117 = memref.load %arg5[%c3_36] : memref<4xf32, #tpu.memory_space<smem>>
      %118 = vector.broadcast %117 : f32 to vector<8x128xf32>
      %119 = arith.mulf %116, %118 : vector<8x128xf32>
      %c3_37 = arith.constant 3 : index
      %120 = memref.load %arg6[%c3_37] : memref<4xf32, #tpu.memory_space<smem>>
      %121 = vector.broadcast %120 : f32 to vector<8x128xf32>
      %122 = arith.addf %119, %121 : vector<8x128xf32>
      %cst_38 = arith.constant 0.000000e+00 : f32
      %123 = vector.broadcast %cst_38 : f32 to vector<8x128xf32>
      %124 = arith.cmpf ogt, %122, %123 : vector<8x128xf32>
      %cst_39 = arith.constant 2.000000e-01 : f32
      %125 = vector.broadcast %cst_39 : f32 to vector<8x128xf32>
      %126 = arith.mulf %125, %122 : vector<8x128xf32>
      %127 = arith.select %124, %122, %126 : vector<8x128xi1>, vector<8x128xf32>
      %c0_40 = arith.constant 0 : index
      %128 = memref.load %arg7[%c0_40] : memref<16xf32, #tpu.memory_space<smem>>
      %129 = vector.broadcast %128 : f32 to vector<8x128xf32>
      %130 = arith.mulf %52, %129 : vector<8x128xf32>
      %c4 = arith.constant 4 : index
      %131 = memref.load %arg7[%c4] : memref<16xf32, #tpu.memory_space<smem>>
      %132 = vector.broadcast %131 : f32 to vector<8x128xf32>
      %133 = arith.mulf %77, %132 : vector<8x128xf32>
      %134 = arith.addf %130, %133 : vector<8x128xf32>
      %c8_41 = arith.constant 8 : index
      %135 = memref.load %arg7[%c8_41] : memref<16xf32, #tpu.memory_space<smem>>
      %136 = vector.broadcast %135 : f32 to vector<8x128xf32>
      %137 = arith.mulf %102, %136 : vector<8x128xf32>
      %138 = arith.addf %134, %137 : vector<8x128xf32>
      %c12 = arith.constant 12 : index
      %139 = memref.load %arg7[%c12] : memref<16xf32, #tpu.memory_space<smem>>
      %140 = vector.broadcast %139 : f32 to vector<8x128xf32>
      %141 = arith.mulf %127, %140 : vector<8x128xf32>
      %142 = arith.addf %138, %141 : vector<8x128xf32>
      %c0_42 = arith.constant 0 : index
      %143 = memref.load %arg8[%c0_42] : memref<4xf32, #tpu.memory_space<smem>>
      %144 = vector.broadcast %143 : f32 to vector<8x128xf32>
      %145 = arith.addf %142, %144 : vector<8x128xf32>
      %c32 = arith.constant 32 : index
      %146 = arith.index_cast %1 : i32 to index
      %147 = vector.load %arg14[%c32, %146] : memref<64x128xf32, #tpu.memory_space<vmem>>, vector<8x128xf32>
      tpu.vector_store %arg14[%c32, %146], %145 {strides = array<i32>} : memref<64x128xf32, #tpu.memory_space<vmem>>, vector<8x128xf32>,
      %c0_43 = arith.constant 0 : index
      %148 = memref.load %arg17[%c0_43] : memref<4xf32, #tpu.memory_space<smem>>
      %149 = arith.mulf %145, %27 : vector<8x128xf32>
      %150 = vector.shape_cast %149 : vector<8x128xf32> to vector<1x8x128xf32>
      %cst_44 = arith.constant dense<0.000000e+00> : vector<1xf32>
      %151 = vector.multi_reduction <add>, %150, %cst_44 [1, 2] : vector<1x8x128xf32> to vector<1xf32>
      %152 = vector.shape_cast %151 : vector<1xf32> to vector<1x1x1xf32>
      %153 = vector.extract %152[0, 0, 0] : f32 from vector<1x1x1xf32>
      %154 = arith.addf %148, %153 : f32
      %c0_45 = arith.constant 0 : index
      %155 = memref.load %arg17[%c0_45] : memref<4xf32, #tpu.memory_space<smem>>
      memref.store %154, %arg17[%c0_45] : memref<4xf32, #tpu.memory_space<smem>>
      %c0_46 = arith.constant 0 : index
      %156 = memref.load %arg18[%c0_46] : memref<4xf32, #tpu.memory_space<smem>>
      %157 = arith.mulf %145, %145 : vector<8x128xf32>
      %158 = arith.mulf %157, %27 : vector<8x128xf32>
      %159 = vector.shape_cast %158 : vector<8x128xf32> to vector<1x8x128xf32>
      %cst_47 = arith.constant dense<0.000000e+00> : vector<1xf32>
      %160 = vector.multi_reduction <add>, %159, %cst_47 [1, 2] : vector<1x8x128xf32> to vector<1xf32>
      %161 = vector.shape_cast %160 : vector<1xf32> to vector<1x1x1xf32>
      %162 = vector.extract %161[0, 0, 0] : f32 from vector<1x1x1xf32>
      %163 = arith.addf %156, %162 : f32
      %c0_48 = arith.constant 0 : index
      %164 = memref.load %arg18[%c0_48] : memref<4xf32, #tpu.memory_space<smem>>
      memref.store %163, %arg18[%c0_48] : memref<4xf32, #tpu.memory_space<smem>>
      %c1_49 = arith.constant 1 : index
      %165 = memref.load %arg7[%c1_49] : memref<16xf32, #tpu.memory_space<smem>>
      %166 = vector.broadcast %165 : f32 to vector<8x128xf32>
      %167 = arith.mulf %52, %166 : vector<8x128xf32>
      %c5 = arith.constant 5 : index
      %168 = memref.load %arg7[%c5] : memref<16xf32, #tpu.memory_space<smem>>
      %169 = vector.broadcast %168 : f32 to vector<8x128xf32>
      %170 = arith.mulf %77, %169 : vector<8x128xf32>
      %171 = arith.addf %167, %170 : vector<8x128xf32>
      %c9 = arith.constant 9 : index
      %172 = memref.load %arg7[%c9] : memref<16xf32, #tpu.memory_space<smem>>
      %173 = vector.broadcast %172 : f32 to vector<8x128xf32>
      %174 = arith.mulf %102, %173 : vector<8x128xf32>
      %175 = arith.addf %171, %174 : vector<8x128xf32>
      %c13 = arith.constant 13 : index
      %176 = memref.load %arg7[%c13] : memref<16xf32, #tpu.memory_space<smem>>
      %177 = vector.broadcast %176 : f32 to vector<8x128xf32>
      %178 = arith.mulf %127, %177 : vector<8x128xf32>
      %179 = arith.addf %175, %178 : vector<8x128xf32>
      %c1_50 = arith.constant 1 : index
      %180 = memref.load %arg8[%c1_50] : memref<4xf32, #tpu.memory_space<smem>>
      %181 = vector.broadcast %180 : f32 to vector<8x128xf32>
      %182 = arith.addf %179, %181 : vector<8x128xf32>
      %c40 = arith.constant 40 : index
      %183 = arith.index_cast %1 : i32 to index
      %184 = vector.load %arg14[%c40, %183] : memref<64x128xf32, #tpu.memory_space<vmem>>, vector<8x128xf32>
      tpu.vector_store %arg14[%c40, %183], %182 {strides = array<i32>} : memref<64x128xf32, #tpu.memory_space<vmem>>, vector<8x128xf32>,
      %c1_51 = arith.constant 1 : index
      %185 = memref.load %arg17[%c1_51] : memref<4xf32, #tpu.memory_space<smem>>
      %186 = arith.mulf %182, %27 : vector<8x128xf32>
      %187 = vector.shape_cast %186 : vector<8x128xf32> to vector<1x8x128xf32>
      %cst_52 = arith.constant dense<0.000000e+00> : vector<1xf32>
      %188 = vector.multi_reduction <add>, %187, %cst_52 [1, 2] : vector<1x8x128xf32> to vector<1xf32>
      %189 = vector.shape_cast %188 : vector<1xf32> to vector<1x1x1xf32>
      %190 = vector.extract %189[0, 0, 0] : f32 from vector<1x1x1xf32>
      %191 = arith.addf %185, %190 : f32
      %c1_53 = arith.constant 1 : index
      %192 = memref.load %arg17[%c1_53] : memref<4xf32, #tpu.memory_space<smem>>
      memref.store %191, %arg17[%c1_53] : memref<4xf32, #tpu.memory_space<smem>>
      %c1_54 = arith.constant 1 : index
      %193 = memref.load %arg18[%c1_54] : memref<4xf32, #tpu.memory_space<smem>>
      %194 = arith.mulf %182, %182 : vector<8x128xf32>
      %195 = arith.mulf %194, %27 : vector<8x128xf32>
      %196 = vector.shape_cast %195 : vector<8x128xf32> to vector<1x8x128xf32>
      %cst_55 = arith.constant dense<0.000000e+00> : vector<1xf32>
      %197 = vector.multi_reduction <add>, %196, %cst_55 [1, 2] : vector<1x8x128xf32> to vector<1xf32>
      %198 = vector.shape_cast %197 : vector<1xf32> to vector<1x1x1xf32>
      %199 = vector.extract %198[0, 0, 0] : f32 from vector<1x1x1xf32>
      %200 = arith.addf %193, %199 : f32
      %c1_56 = arith.constant 1 : index
      %201 = memref.load %arg18[%c1_56] : memref<4xf32, #tpu.memory_space<smem>>
      memref.store %200, %arg18[%c1_56] : memref<4xf32, #tpu.memory_space<smem>>
      %c2_57 = arith.constant 2 : index
      %202 = memref.load %arg7[%c2_57] : memref<16xf32, #tpu.memory_space<smem>>
      %203 = vector.broadcast %202 : f32 to vector<8x128xf32>
      %204 = arith.mulf %52, %203 : vector<8x128xf32>
      %c6 = arith.constant 6 : index
      %205 = memref.load %arg7[%c6] : memref<16xf32, #tpu.memory_space<smem>>
      %206 = vector.broadcast %205 : f32 to vector<8x128xf32>
      %207 = arith.mulf %77, %206 : vector<8x128xf32>
      %208 = arith.addf %204, %207 : vector<8x128xf32>
      %c10 = arith.constant 10 : index
      %209 = memref.load %arg7[%c10] : memref<16xf32, #tpu.memory_space<smem>>
      %210 = vector.broadcast %209 : f32 to vector<8x128xf32>
      %211 = arith.mulf %102, %210 : vector<8x128xf32>
      %212 = arith.addf %208, %211 : vector<8x128xf32>
      %c14 = arith.constant 14 : index
      %213 = memref.load %arg7[%c14] : memref<16xf32, #tpu.memory_space<smem>>
      %214 = vector.broadcast %213 : f32 to vector<8x128xf32>
      %215 = arith.mulf %127, %214 : vector<8x128xf32>
      %216 = arith.addf %212, %215 : vector<8x128xf32>
      %c2_58 = arith.constant 2 : index
      %217 = memref.load %arg8[%c2_58] : memref<4xf32, #tpu.memory_space<smem>>
      %218 = vector.broadcast %217 : f32 to vector<8x128xf32>
      %219 = arith.addf %216, %218 : vector<8x128xf32>
      %c48 = arith.constant 48 : index
      %220 = arith.index_cast %1 : i32 to index
      %221 = vector.load %arg14[%c48, %220] : memref<64x128xf32, #tpu.memory_space<vmem>>, vector<8x128xf32>
      tpu.vector_store %arg14[%c48, %220], %219 {strides = array<i32>} : memref<64x128xf32, #tpu.memory_space<vmem>>, vector<8x128xf32>,
      %c2_59 = arith.constant 2 : index
      %222 = memref.load %arg17[%c2_59] : memref<4xf32, #tpu.memory_space<smem>>
      %223 = arith.mulf %219, %27 : vector<8x128xf32>
      %224 = vector.shape_cast %223 : vector<8x128xf32> to vector<1x8x128xf32>
      %cst_60 = arith.constant dense<0.000000e+00> : vector<1xf32>
      %225 = vector.multi_reduction <add>, %224, %cst_60 [1, 2] : vector<1x8x128xf32> to vector<1xf32>
      %226 = vector.shape_cast %225 : vector<1xf32> to vector<1x1x1xf32>
      %227 = vector.extract %226[0, 0, 0] : f32 from vector<1x1x1xf32>
      %228 = arith.addf %222, %227 : f32
      %c2_61 = arith.constant 2 : index
      %229 = memref.load %arg17[%c2_61] : memref<4xf32, #tpu.memory_space<smem>>
      memref.store %228, %arg17[%c2_61] : memref<4xf32, #tpu.memory_space<smem>>
      %c2_62 = arith.constant 2 : index
      %230 = memref.load %arg18[%c2_62] : memref<4xf32, #tpu.memory_space<smem>>
      %231 = arith.mulf %219, %219 : vector<8x128xf32>
      %232 = arith.mulf %231, %27 : vector<8x128xf32>
      %233 = vector.shape_cast %232 : vector<8x128xf32> to vector<1x8x128xf32>
      %cst_63 = arith.constant dense<0.000000e+00> : vector<1xf32>
      %234 = vector.multi_reduction <add>, %233, %cst_63 [1, 2] : vector<1x8x128xf32> to vector<1xf32>
      %235 = vector.shape_cast %234 : vector<1xf32> to vector<1x1x1xf32>
      %236 = vector.extract %235[0, 0, 0] : f32 from vector<1x1x1xf32>
      %237 = arith.addf %230, %236 : f32
      %c2_64 = arith.constant 2 : index
      %238 = memref.load %arg18[%c2_64] : memref<4xf32, #tpu.memory_space<smem>>
      memref.store %237, %arg18[%c2_64] : memref<4xf32, #tpu.memory_space<smem>>
      %c3_65 = arith.constant 3 : index
      %239 = memref.load %arg7[%c3_65] : memref<16xf32, #tpu.memory_space<smem>>
      %240 = vector.broadcast %239 : f32 to vector<8x128xf32>
      %241 = arith.mulf %52, %240 : vector<8x128xf32>
      %c7 = arith.constant 7 : index
      %242 = memref.load %arg7[%c7] : memref<16xf32, #tpu.memory_space<smem>>
      %243 = vector.broadcast %242 : f32 to vector<8x128xf32>
      %244 = arith.mulf %77, %243 : vector<8x128xf32>
      %245 = arith.addf %241, %244 : vector<8x128xf32>
      %c11 = arith.constant 11 : index
      %246 = memref.load %arg7[%c11] : memref<16xf32, #tpu.memory_space<smem>>
      %247 = vector.broadcast %246 : f32 to vector<8x128xf32>
      %248 = arith.mulf %102, %247 : vector<8x128xf32>
      %249 = arith.addf %245, %248 : vector<8x128xf32>
      %c15 = arith.constant 15 : index
      %250 = memref.load %arg7[%c15] : memref<16xf32, #tpu.memory_space<smem>>
      %251 = vector.broadcast %250 : f32 to vector<8x128xf32>
      %252 = arith.mulf %127, %251 : vector<8x128xf32>
      %253 = arith.addf %249, %252 : vector<8x128xf32>
      %c3_66 = arith.constant 3 : index
      %254 = memref.load %arg8[%c3_66] : memref<4xf32, #tpu.memory_space<smem>>
      %255 = vector.broadcast %254 : f32 to vector<8x128xf32>
      %256 = arith.addf %253, %255 : vector<8x128xf32>
      %c56 = arith.constant 56 : index
      %257 = arith.index_cast %1 : i32 to index
      %258 = vector.load %arg14[%c56, %257] : memref<64x128xf32, #tpu.memory_space<vmem>>, vector<8x128xf32>
      tpu.vector_store %arg14[%c56, %257], %256 {strides = array<i32>} : memref<64x128xf32, #tpu.memory_space<vmem>>, vector<8x128xf32>,
      %c3_67 = arith.constant 3 : index
      %259 = memref.load %arg17[%c3_67] : memref<4xf32, #tpu.memory_space<smem>>
      %260 = arith.mulf %256, %27 : vector<8x128xf32>
      %261 = vector.shape_cast %260 : vector<8x128xf32> to vector<1x8x128xf32>
      %cst_68 = arith.constant dense<0.000000e+00> : vector<1xf32>
      %262 = vector.multi_reduction <add>, %261, %cst_68 [1, 2] : vector<1x8x128xf32> to vector<1xf32>
      %263 = vector.shape_cast %262 : vector<1xf32> to vector<1x1x1xf32>
      %264 = vector.extract %263[0, 0, 0] : f32 from vector<1x1x1xf32>
      %265 = arith.addf %259, %264 : f32
      %c3_69 = arith.constant 3 : index
      %266 = memref.load %arg17[%c3_69] : memref<4xf32, #tpu.memory_space<smem>>
      memref.store %265, %arg17[%c3_69] : memref<4xf32, #tpu.memory_space<smem>>
      %c3_70 = arith.constant 3 : index
      %267 = memref.load %arg18[%c3_70] : memref<4xf32, #tpu.memory_space<smem>>
      %268 = arith.mulf %256, %256 : vector<8x128xf32>
      %269 = arith.mulf %268, %27 : vector<8x128xf32>
      %270 = vector.shape_cast %269 : vector<8x128xf32> to vector<1x8x128xf32>
      %cst_71 = arith.constant dense<0.000000e+00> : vector<1xf32>
      %271 = vector.multi_reduction <add>, %270, %cst_71 [1, 2] : vector<1x8x128xf32> to vector<1xf32>
      %272 = vector.shape_cast %271 : vector<1xf32> to vector<1x1x1xf32>
      %273 = vector.extract %272[0, 0, 0] : f32 from vector<1x1x1xf32>
      %274 = arith.addf %267, %273 : f32
      %c3_72 = arith.constant 3 : index
      %275 = memref.load %arg18[%c3_72] : memref<4xf32, #tpu.memory_space<smem>>
      memref.store %274, %arg18[%c3_72] : memref<4xf32, #tpu.memory_space<smem>>
    } else {
    }
    %c2_i32 = arith.constant 2 : i32
    %13 = arith.cmpi eq, %arg0, %c2_i32 : i32
    %14 = arith.extui %13 : i1 to i32
    %c0_i32_5 = arith.constant 0 : i32
    %15 = arith.cmpi ne, %14, %c0_i32_5 : i32
    scf.if %15 {
      %c0 = arith.constant 0 : index
      %16 = memref.load %arg17[%c0] : memref<4xf32, #tpu.memory_space<smem>>
      %cst = arith.constant 1.250000e-01 : f32
      %17 = arith.mulf %16, %cst : f32
      %c0_6 = arith.constant 0 : index
      %18 = memref.load %arg18[%c0_6] : memref<4xf32, #tpu.memory_space<smem>>
      %cst_7 = arith.constant 1.250000e-01 : f32
      %19 = arith.mulf %18, %cst_7 : f32
      %20 = arith.mulf %17, %17 : f32
      %21 = arith.subf %19, %20 : f32
      %c32 = arith.constant 32 : index
      %22 = arith.index_cast %1 : i32 to index
      %23 = vector.load %arg14[%c32, %22] : memref<64x128xf32, #tpu.memory_space<vmem>>, vector<8x128xf32>
      %cst_8 = arith.constant 9.99999974E-6 : f32
      %24 = arith.addf %21, %cst_8 : f32
      %25 = vector.broadcast %24 : f32 to vector<8x128xf32>
      %26 = math.rsqrt %25 : vector<8x128xf32>
      %27 = vector.broadcast %17 : f32 to vector<8x128xf32>
      %28 = arith.subf %23, %27 : vector<8x128xf32>
      %29 = arith.mulf %28, %26 : vector<8x128xf32>
      %c0_9 = arith.constant 0 : index
      %30 = memref.load %arg9[%c0_9] : memref<4xf32, #tpu.memory_space<smem>>
      %31 = vector.broadcast %30 : f32 to vector<8x128xf32>
      %32 = arith.mulf %29, %31 : vector<8x128xf32>
      %c0_10 = arith.constant 0 : index
      %33 = memref.load %arg10[%c0_10] : memref<4xf32, #tpu.memory_space<smem>>
      %34 = vector.broadcast %33 : f32 to vector<8x128xf32>
      %35 = arith.addf %32, %34 : vector<8x128xf32>
      %cst_11 = arith.constant 0.000000e+00 : f32
      %36 = vector.broadcast %cst_11 : f32 to vector<8x128xf32>
      %37 = arith.cmpf ogt, %35, %36 : vector<8x128xf32>
      %cst_12 = arith.constant 2.000000e-01 : f32
      %38 = vector.broadcast %cst_12 : f32 to vector<8x128xf32>
      %39 = arith.mulf %38, %35 : vector<8x128xf32>
      %40 = arith.select %37, %35, %39 : vector<8x128xi1>, vector<8x128xf32>
      %c0_13 = arith.constant 0 : index
      %41 = memref.load %arg11[%c0_13] : memref<4xf32, #tpu.memory_space<smem>>
      %42 = vector.broadcast %41 : f32 to vector<8x128xf32>
      %43 = arith.mulf %40, %42 : vector<8x128xf32>
      %c1 = arith.constant 1 : index
      %44 = memref.load %arg17[%c1] : memref<4xf32, #tpu.memory_space<smem>>
      %cst_14 = arith.constant 1.250000e-01 : f32
      %45 = arith.mulf %44, %cst_14 : f32
      %c1_15 = arith.constant 1 : index
      %46 = memref.load %arg18[%c1_15] : memref<4xf32, #tpu.memory_space<smem>>
      %cst_16 = arith.constant 1.250000e-01 : f32
      %47 = arith.mulf %46, %cst_16 : f32
      %48 = arith.mulf %45, %45 : f32
      %49 = arith.subf %47, %48 : f32
      %c40 = arith.constant 40 : index
      %50 = arith.index_cast %1 : i32 to index
      %51 = vector.load %arg14[%c40, %50] : memref<64x128xf32, #tpu.memory_space<vmem>>, vector<8x128xf32>
      %cst_17 = arith.constant 9.99999974E-6 : f32
      %52 = arith.addf %49, %cst_17 : f32
      %53 = vector.broadcast %52 : f32 to vector<8x128xf32>
      %54 = math.rsqrt %53 : vector<8x128xf32>
      %55 = vector.broadcast %45 : f32 to vector<8x128xf32>
      %56 = arith.subf %51, %55 : vector<8x128xf32>
      %57 = arith.mulf %56, %54 : vector<8x128xf32>
      %c1_18 = arith.constant 1 : index
      %58 = memref.load %arg9[%c1_18] : memref<4xf32, #tpu.memory_space<smem>>
      %59 = vector.broadcast %58 : f32 to vector<8x128xf32>
      %60 = arith.mulf %57, %59 : vector<8x128xf32>
      %c1_19 = arith.constant 1 : index
      %61 = memref.load %arg10[%c1_19] : memref<4xf32, #tpu.memory_space<smem>>
      %62 = vector.broadcast %61 : f32 to vector<8x128xf32>
      %63 = arith.addf %60, %62 : vector<8x128xf32>
      %cst_20 = arith.constant 0.000000e+00 : f32
      %64 = vector.broadcast %cst_20 : f32 to vector<8x128xf32>
      %65 = arith.cmpf ogt, %63, %64 : vector<8x128xf32>
      %cst_21 = arith.constant 2.000000e-01 : f32
      %66 = vector.broadcast %cst_21 : f32 to vector<8x128xf32>
      %67 = arith.mulf %66, %63 : vector<8x128xf32>
      %68 = arith.select %65, %63, %67 : vector<8x128xi1>, vector<8x128xf32>
      %c1_22 = arith.constant 1 : index
      %69 = memref.load %arg11[%c1_22] : memref<4xf32, #tpu.memory_space<smem>>
      %70 = vector.broadcast %69 : f32 to vector<8x128xf32>
      %71 = arith.mulf %68, %70 : vector<8x128xf32>
      %72 = arith.addf %43, %71 : vector<8x128xf32>
      %c2 = arith.constant 2 : index
      %73 = memref.load %arg17[%c2] : memref<4xf32, #tpu.memory_space<smem>>
      %cst_23 = arith.constant 1.250000e-01 : f32
      %74 = arith.mulf %73, %cst_23 : f32
      %c2_24 = arith.constant 2 : index
      %75 = memref.load %arg18[%c2_24] : memref<4xf32, #tpu.memory_space<smem>>
      %cst_25 = arith.constant 1.250000e-01 : f32
      %76 = arith.mulf %75, %cst_25 : f32
      %77 = arith.mulf %74, %74 : f32
      %78 = arith.subf %76, %77 : f32
      %c48 = arith.constant 48 : index
      %79 = arith.index_cast %1 : i32 to index
      %80 = vector.load %arg14[%c48, %79] : memref<64x128xf32, #tpu.memory_space<vmem>>, vector<8x128xf32>
      %cst_26 = arith.constant 9.99999974E-6 : f32
      %81 = arith.addf %78, %cst_26 : f32
      %82 = vector.broadcast %81 : f32 to vector<8x128xf32>
      %83 = math.rsqrt %82 : vector<8x128xf32>
      %84 = vector.broadcast %74 : f32 to vector<8x128xf32>
      %85 = arith.subf %80, %84 : vector<8x128xf32>
      %86 = arith.mulf %85, %83 : vector<8x128xf32>
      %c2_27 = arith.constant 2 : index
      %87 = memref.load %arg9[%c2_27] : memref<4xf32, #tpu.memory_space<smem>>
      %88 = vector.broadcast %87 : f32 to vector<8x128xf32>
      %89 = arith.mulf %86, %88 : vector<8x128xf32>
      %c2_28 = arith.constant 2 : index
      %90 = memref.load %arg10[%c2_28] : memref<4xf32, #tpu.memory_space<smem>>
      %91 = vector.broadcast %90 : f32 to vector<8x128xf32>
      %92 = arith.addf %89, %91 : vector<8x128xf32>
      %cst_29 = arith.constant 0.000000e+00 : f32
      %93 = vector.broadcast %cst_29 : f32 to vector<8x128xf32>
      %94 = arith.cmpf ogt, %92, %93 : vector<8x128xf32>
      %cst_30 = arith.constant 2.000000e-01 : f32
      %95 = vector.broadcast %cst_30 : f32 to vector<8x128xf32>
      %96 = arith.mulf %95, %92 : vector<8x128xf32>
      %97 = arith.select %94, %92, %96 : vector<8x128xi1>, vector<8x128xf32>
      %c2_31 = arith.constant 2 : index
      %98 = memref.load %arg11[%c2_31] : memref<4xf32, #tpu.memory_space<smem>>
      %99 = vector.broadcast %98 : f32 to vector<8x128xf32>
      %100 = arith.mulf %97, %99 : vector<8x128xf32>
      %101 = arith.addf %72, %100 : vector<8x128xf32>
      %c3 = arith.constant 3 : index
      %102 = memref.load %arg17[%c3] : memref<4xf32, #tpu.memory_space<smem>>
      %cst_32 = arith.constant 1.250000e-01 : f32
      %103 = arith.mulf %102, %cst_32 : f32
      %c3_33 = arith.constant 3 : index
      %104 = memref.load %arg18[%c3_33] : memref<4xf32, #tpu.memory_space<smem>>
      %cst_34 = arith.constant 1.250000e-01 : f32
      %105 = arith.mulf %104, %cst_34 : f32
      %106 = arith.mulf %103, %103 : f32
      %107 = arith.subf %105, %106 : f32
      %c56 = arith.constant 56 : index
      %108 = arith.index_cast %1 : i32 to index
      %109 = vector.load %arg14[%c56, %108] : memref<64x128xf32, #tpu.memory_space<vmem>>, vector<8x128xf32>
      %cst_35 = arith.constant 9.99999974E-6 : f32
      %110 = arith.addf %107, %cst_35 : f32
      %111 = vector.broadcast %110 : f32 to vector<8x128xf32>
      %112 = math.rsqrt %111 : vector<8x128xf32>
      %113 = vector.broadcast %103 : f32 to vector<8x128xf32>
      %114 = arith.subf %109, %113 : vector<8x128xf32>
      %115 = arith.mulf %114, %112 : vector<8x128xf32>
      %c3_36 = arith.constant 3 : index
      %116 = memref.load %arg9[%c3_36] : memref<4xf32, #tpu.memory_space<smem>>
      %117 = vector.broadcast %116 : f32 to vector<8x128xf32>
      %118 = arith.mulf %115, %117 : vector<8x128xf32>
      %c3_37 = arith.constant 3 : index
      %119 = memref.load %arg10[%c3_37] : memref<4xf32, #tpu.memory_space<smem>>
      %120 = vector.broadcast %119 : f32 to vector<8x128xf32>
      %121 = arith.addf %118, %120 : vector<8x128xf32>
      %cst_38 = arith.constant 0.000000e+00 : f32
      %122 = vector.broadcast %cst_38 : f32 to vector<8x128xf32>
      %123 = arith.cmpf ogt, %121, %122 : vector<8x128xf32>
      %cst_39 = arith.constant 2.000000e-01 : f32
      %124 = vector.broadcast %cst_39 : f32 to vector<8x128xf32>
      %125 = arith.mulf %124, %121 : vector<8x128xf32>
      %126 = arith.select %123, %121, %125 : vector<8x128xi1>, vector<8x128xf32>
      %c3_40 = arith.constant 3 : index
      %127 = memref.load %arg11[%c3_40] : memref<4xf32, #tpu.memory_space<smem>>
      %128 = vector.broadcast %127 : f32 to vector<8x128xf32>
      %129 = arith.mulf %126, %128 : vector<8x128xf32>
      %130 = arith.addf %101, %129 : vector<8x128xf32>
      %c0_41 = arith.constant 0 : index
      %131 = memref.load %arg12[%c0_41] : memref<1xf32, #tpu.memory_space<smem>>
      %132 = vector.broadcast %131 : f32 to vector<8x128xf32>
      %133 = arith.addf %130, %132 : vector<8x128xf32>
      %cst_42 = arith.constant 0.000000e+00 : f32
      %134 = vector.broadcast %cst_42 : f32 to vector<8x128xf32>
      %135 = arith.subf %134, %133 : vector<8x128xf32>
      %136 = math.exp %135 : vector<8x128xf32>
      %cst_43 = arith.constant 1.000000e+00 : f32
      %137 = vector.broadcast %cst_43 : f32 to vector<8x128xf32>
      %138 = arith.addf %137, %136 : vector<8x128xf32>
      %139 = tpu.reciprocal %138 : vector<8x128xf32> -> vector<8x128xf32>
      %c0_44 = arith.constant 0 : index
      %c0_45 = arith.constant 0 : index
      %140 = vector.load %arg13[%c0_44, %c0_45] : memref<8x128xf32, #tpu.memory_space<vmem>>, vector<8x128xf32>
      tpu.vector_store %arg13[%c0_44, %c0_45], %139 {strides = array<i32>} : memref<8x128xf32, #tpu.memory_space<vmem>>, vector<8x128xf32>,
    } else {
    }
    return
  }
  func.func @transform_0(%arg0: i32, %arg1: i32) -> (i32, i32) {
    %c0_i32 = arith.constant 0 : i32
    %0 = arith.cmpi eq, %arg0, %c0_i32 : i32
    %c0_i32_0 = arith.constant 0 : i32
    %1 = arith.select %0, %arg1, %c0_i32_0 : i32
    %c0_i32_1 = arith.constant 0 : i32
    %c0_i32_2 = arith.constant 0 : i32
    return %c0_i32_1, %1 : i32, i32
  }
  func.func @transform_1(%arg0: i32, %arg1: i32) -> i32 {
    %c0_i32 = arith.constant 0 : i32
    %c0_i32_0 = arith.constant 0 : i32
    return %c0_i32 : i32
  }
  func.func @transform_2(%arg0: i32, %arg1: i32) -> i32 {
    %c0_i32 = arith.constant 0 : i32
    %c0_i32_0 = arith.constant 0 : i32
    return %c0_i32 : i32
  }
  func.func @transform_3(%arg0: i32, %arg1: i32) -> i32 {
    %c0_i32 = arith.constant 0 : i32
    %c0_i32_0 = arith.constant 0 : i32
    return %c0_i32 : i32
  }
  func.func @transform_4(%arg0: i32, %arg1: i32) -> i32 {
    %c0_i32 = arith.constant 0 : i32
    %c0_i32_0 = arith.constant 0 : i32
    return %c0_i32 : i32
  }
  func.func @transform_5(%arg0: i32, %arg1: i32) -> i32 {
    %c0_i32 = arith.constant 0 : i32
    %c0_i32_0 = arith.constant 0 : i32
    return %c0_i32 : i32
  }
  func.func @transform_6(%arg0: i32, %arg1: i32) -> i32 {
    %c0_i32 = arith.constant 0 : i32
    %c0_i32_0 = arith.constant 0 : i32
    return %c0_i32 : i32
  }
  func.func @transform_7(%arg0: i32, %arg1: i32) -> i32 {
    %c0_i32 = arith.constant 0 : i32
    %c0_i32_0 = arith.constant 0 : i32
    return %c0_i32 : i32
  }
  func.func @transform_8(%arg0: i32, %arg1: i32) -> i32 {
    %c0_i32 = arith.constant 0 : i32
    %c0_i32_0 = arith.constant 0 : i32
    return %c0_i32 : i32
  }
  func.func @transform_9(%arg0: i32, %arg1: i32) -> i32 {
    %c0_i32 = arith.constant 0 : i32
    %c0_i32_0 = arith.constant 0 : i32
    return %c0_i32 : i32
  }
  func.func @transform_10(%arg0: i32, %arg1: i32) -> i32 {
    %c0_i32 = arith.constant 0 : i32
    %c0_i32_0 = arith.constant 0 : i32
    return %c0_i32 : i32
  }
  func.func @transform_11(%arg0: i32, %arg1: i32) -> (i32, i32) {
    %c2_i32 = arith.constant 2 : i32
    %0 = arith.cmpi eq, %arg0, %c2_i32 : i32
    %c0_i32 = arith.constant 0 : i32
    %1 = arith.select %0, %arg1, %c0_i32 : i32
    %c0_i32_0 = arith.constant 0 : i32
    %c0_i32_1 = arith.constant 0 : i32
    return %c0_i32_0, %1 : i32, i32
  }
}

</mosaic_0001>

<llo_original>
// kernel: tpu_custom_call.1
$region0: #{tpu_custom_call.1}
  #allocation0 [shape = 'u32[]', space=smem, size = 0x4, offset = 0x4, fixed_abs, tag = 'smem constant byte address 0x4 - core index']
  #allocation1 [shape = 'u32[144,128]{1,0:T(1,128)}', space=vmem, size = 0x12000, scoped, tag = 'internal scratch']
  #allocation2 [shape = 'f32[64,128]{1,0:T(8,128)}', space=vmem, size = 0x8000, scoped, tag = 'scratch operand']
  #allocation3 [shape = 'f32[4]{0:T(128)}', space=smem, size = 0x200, scoped, tag = 'scratch operand']
  #allocation4 [shape = 'f32[4]{0:T(128)}', space=smem, size = 0x200, scoped, tag = 'scratch operand']
  #allocation5 [shape = 'f32[4]{0:T(128)}', space=smem, size = 0x200, scoped, tag = 'scratch operand']
  #allocation6 [shape = 'f32[4]{0:T(128)}', space=smem, size = 0x200, scoped, tag = 'scratch operand']
  #allocation7 [shape = 'f32[1]{0:T(128)S(6)}', space=smem, size = 0x200, scoped, tag = 'scoped memory for tpu_custom_call.1']
  %s0 = inlined_call_operand.hbm [shape: f32[120,128], index: 0, kind: input, shape index: {}]
  %s1 = inlined_call_operand.vmem [shape: f32[60], index: 1, kind: input, shape index: {}]
  %s2 = inlined_call_operand.vmem [shape: f32[4], index: 2, kind: input, shape index: {}]
  %s3 = inlined_call_operand.vmem [shape: f32[4], index: 3, kind: input, shape index: {}]
  %s4 = inlined_call_operand.vmem [shape: f32[4], index: 4, kind: input, shape index: {}]
  %s5 = inlined_call_operand.vmem [shape: f32[16], index: 5, kind: input, shape index: {}]
  %s6 = inlined_call_operand.vmem [shape: f32[4], index: 6, kind: input, shape index: {}]
  %s7 = inlined_call_operand.vmem [shape: f32[4], index: 7, kind: input, shape index: {}]
  %s8 = inlined_call_operand.vmem [shape: f32[4], index: 8, kind: input, shape index: {}]
  %s9 = inlined_call_operand.vmem [shape: f32[4], index: 9, kind: input, shape index: {}]
  %s10 = inlined_call_operand.<no memory space> [shape: f32[1], index: 10, kind: input, shape index: {}]
  %s11 = inlined_call_operand.hbm [shape: f32[8,128], index: 11, kind: output, shape index: {}]
  %s12 = sld [smem:[#allocation0]]
  $region133: #{tpu_custom_call.1} parent=0
    _
  %s14 = ssub.s32 1, %s12
  %s15 = scalar_select 0, %s14, %s12
  %16 = sst [smem:[#allocation7]] %s10
  $region1: #{tpu_custom_call.1} parent=0
    #allocation8 [shape = 'u8[122880]{0}', space=vmem, size = 0x1e000, scoped, tag = 'input window, operand 0']
    #allocation9 [shape = 's32[2]{0}', space=sflag, size = 0x8, scoped, tag = 'scoped memory for tpu_custom_call.1']
    #allocation10 [shape = 's32[2]{0}', space=sflag, size = 0x8, scoped, tag = 'scoped memory for tpu_custom_call.1']
    #allocation11 [shape = 's32[2]{0}', space=sflag, size = 0x8, scoped, tag = 'scoped memory for tpu_custom_call.1']
    #allocation12 [shape = 'u8[512]{0}', space=smem, size = 0x200, scoped, tag = 'input window, operand 1, single buffered']
    #allocation13 [shape = 'u8[512]{0}', space=smem, size = 0x200, scoped, tag = 'input window, operand 2, single buffered']
    #allocation14 [shape = 's32[1]{0}', space=sflag, size = 0x4, scoped, tag = 'scoped memory for tpu_custom_call.1']
    #allocation15 [shape = 'u8[512]{0}', space=smem, size = 0x200, scoped, tag = 'input window, operand 3, single buffered']
    #allocation16 [shape = 'u8[512]{0}', space=smem, size = 0x200, scoped, tag = 'input window, operand 4, single buffered']
    #allocation17 [shape = 's32[1]{0}', space=sflag, size = 0x4, scoped, tag = 'scoped memory for tpu_custom_call.1']
    #allocation18 [shape = 'u8[512]{0}', space=smem, size = 0x200, scoped, tag = 'input window, operand 5, single buffered']
    #allocation19 [shape = 'u8[512]{0}', space=smem, size = 0x200, scoped, tag = 'input window, operand 6, single buffered']
    #allocation20 [shape = 's32[1]{0}', space=sflag, size = 0x4, scoped, tag = 'scoped memory for tpu_custom_call.1']
    #allocation21 [shape = 'u8[512]{0}', space=smem, size = 0x200, scoped, tag = 'input window, operand 7, single buffered']
    #allocation22 [shape = 'u8[512]{0}', space=smem, size = 0x200, scoped, tag = 'input window, operand 8, single buffered']
    #allocation23 [shape = 's32[1]{0}', space=sflag, size = 0x4, scoped, tag = 'scoped memory for tpu_custom_call.1']
    #allocation24 [shape = 'u8[512]{0}', space=smem, size = 0x200, scoped, tag = 'input window, operand 9, single buffered']
    #allocation25 [shape = 'u8[8192]{0}', space=vmem, size = 0x2000, scoped, tag = 'output window, operand 0']
    %17 = vsyncpa [#allocation9], 0
    %s18 = scalar_lea.sflag [#allocation9], 1
    %19 = vsyncpa %s18, 0
    %20 = vsyncpa [#allocation11], 0
    %21 = vsyncpa [#allocation14], 0
    %22 = vsyncpa [#allocation17], 0
    %23 = vsyncpa [#allocation20], 0
    %24 = vsyncpa [#allocation23], 0
    %25 = vsyncpa [#allocation10], 0
    %s26 = scalar_lea.sflag [#allocation10], 1
    %27 = vsyncpa %s26, 0
    loop: start=0, step=1, limit=5
    $region2: #{tpu_custom_call.1} parent=1 // loop_pre_header
      _
    $region3: #{tpu_custom_call.1} parent=1 // loop_header
      %s29 = sphi 0, %s33
      %p30 = scmp.ge.s32.totalorder %s29, 5
      %s36 = sphi 0, %s48
      %s37 = sphi 0, %s44
      %s38 = sphi 0, %s36
      %s39 = sphi 0, %s37
      %s40 = sphi 0, %s38
      %s41 = sphi 0, %s39
      %s55 = sphi 0, %s57
      %s58 = sphi 0, %s55
      %s59 = sphi 0, %s58
      %s75 = sphi 0, %s59
      %s79 = sphi 0, %s79
      %s81 = sphi 0, %s79
      %s82 = sphi 0, %s81
      %s96 = sphi 0, %s82
      %s100 = sphi 0, %s100
      %s102 = sphi 0, %s100
      %s103 = sphi 0, %s102
      %s117 = sphi 0, %s103
      %s121 = sphi 0, %s121
      %s123 = sphi 0, %s121
      %s124 = sphi 0, %s123
      %s138 = sphi 0, %s124
      %s142 = sphi 0, %s142
      %s144 = sphi 0, %s142
      %s145 = sphi 0, %s144
      %s159 = sphi 0, %s145
      %s163 = sphi 0, %s163
      %s165 = sphi 0, %s163
      %s166 = sphi 0, %s165
      %s180 = sphi 0, %s166
      %s184 = sphi 0, %s184
      %s186 = sphi 0, %s184
      %s187 = sphi 0, %s186
      %s201 = sphi 0, %s187
      %s205 = sphi 0, %s205
      %s207 = sphi 0, %s205
      %s208 = sphi 0, %s207
      %s222 = sphi 0, %s208
      %s226 = sphi 0, %s226
      %s228 = sphi 0, %s226
      %s229 = sphi 0, %s228
      %s243 = sphi 0, %s229
      %s247 = sphi 0, %s247
      %s249 = sphi 0, %s247
      %s250 = sphi 0, %s249
      %s264 = sphi 0, %s250
      %s268 = sphi 0, %s268
      %s270 = sphi 0, %s268
      %s271 = sphi 0, %s270
      %s285 = sphi 0, %s271
      %s295 = sphi 0, %s297
      %s298 = sphi 0, %s295
      %s299 = sphi 0, %s298
      %s315 = sphi 0, %s299
    $region4: #{tpu_custom_call.1} parent=1 // loop_header_branch
      %32 = sbr.rel (%p30) target = $region8
    $region5: #{tpu_custom_call.1} parent=1 // loop_body
      %s34 = ssub.s32 %s29, 1
      %s35 = ssub.s32 %s29, 2
      %s42 = sadd.s32 1, %s37
      %p43 = scmp.ge.s32.totalorder %s42, 1
      %s44 = scalar_select %p43, 0, %s42
      %s45 = sadd.s32 1, %s36
      %s46 = scalar_select %p43, %s45, %s36
      %p47 = scmp.ge.s32.totalorder %s46, 3
      %s48 = scalar_select %p47, 0, %s46
      %p49 = scmp.eq.s32.totalorder %s36, 0
      %s50 = scalar_select %p49, %s37, 0
      %p51 = scmp.eq.s32.totalorder %s48, 0
      %s52 = scalar_select %p51, %s44, 0
      %s53 = ssub.s32 %s50, %s52
      %p54 = scmp.eq.s32.totalorder %s53, 0
      %s56 = sadd.s32 %s55, 1
      %s57 = scalar_select %p54, %s55, %s56
      %p60 = pneg %p54
      %p61 = scmp.eq.s32.totalorder %s29, 2
      %p62 = por %p60, %p61
      %p63 = scmp.ne.s32.totalorder %s55, %s58
      %p64 = scmp.eq.s32.totalorder %s29, 0
      %p65 = por %p63, %p64
      %p66 = scmp.ne.s32.totalorder %s55, %s58
      %p67 = scmp.eq.s32.totalorder %s34, 2
      %p68 = por %p66, %p67
      %p69 = scmp.ne.s32.totalorder %s58, %s59
      %p70 = scmp.eq.s32.totalorder %s34, 0
      %p71 = por %p69, %p70
      %p72 = scmp.ne.s32.totalorder %s58, %s59
      %p73 = scmp.eq.s32.totalorder %s35, 2
      %p74 = por %p72, %p73
      %p76 = scmp.ne.s32.totalorder %s59, %s75
      %p77 = scmp.eq.s32.totalorder %s35, 0
      %p78 = por %p76, %p77
      %s80 = sadd.s32 %s79, 1
      %p83 = scmp.eq.s32.totalorder %s29, 2
      %p84 = scmp.ne.s32.totalorder %s79, %s81
      %p85 = scmp.eq.s32.totalorder %s29, 0
      %p86 = por %p84, %p85
      %p87 = scmp.ne.s32.totalorder %s79, %s81
      %p88 = scmp.eq.s32.totalorder %s34, 2
      %p89 = por %p87, %p88
      %p90 = scmp.ne.s32.totalorder %s81, %s82
      %p91 = scmp.eq.s32.totalorder %s34, 0
      %p92 = por %p90, %p91
      %p93 = scmp.ne.s32.totalorder %s81, %s82
      %p94 = scmp.eq.s32.totalorder %s35, 2
      %p95 = por %p93, %p94
      %p97 = scmp.ne.s32.totalorder %s82, %s96
      %p98 = scmp.eq.s32.totalorder %s35, 0
      %p99 = por %p97, %p98
      %s101 = sadd.s32 %s100, 1
      %p104 = scmp.eq.s32.totalorder %s29, 2
      %p105 = scmp.ne.s32.totalorder %s100, %s102
      %p106 = scmp.eq.s32.totalorder %s29, 0
      %p107 = por %p105, %p106
      %p108 = scmp.ne.s32.totalorder %s100, %s102
      %p109 = scmp.eq.s32.totalorder %s34, 2
      %p110 = por %p108, %p109
      %p111 = scmp.ne.s32.totalorder %s102, %s103
      %p112 = scmp.eq.s32.totalorder %s34, 0
      %p113 = por %p111, %p112
      %p114 = scmp.ne.s32.totalorder %s102, %s103
      %p115 = scmp.eq.s32.totalorder %s35, 2
      %p116 = por %p114, %p115
      %p118 = scmp.ne.s32.totalorder %s103, %s117
      %p119 = scmp.eq.s32.totalorder %s35, 0
      %p120 = por %p118, %p119
      %s122 = sadd.s32 %s121, 1
      %p125 = scmp.eq.s32.totalorder %s29, 2
      %p126 = scmp.ne.s32.totalorder %s121, %s123
      %p127 = scmp.eq.s32.totalorder %s29, 0
      %p128 = por %p126, %p127
      %p129 = scmp.ne.s32.totalorder %s121, %s123
      %p130 = scmp.eq.s32.totalorder %s34, 2
      %p131 = por %p129, %p130
      %p132 = scmp.ne.s32.totalorder %s123, %s124
      %p133 = scmp.eq.s32.totalorder %s34, 0
      %p134 = por %p132, %p133
      %p135 = scmp.ne.s32.totalorder %s123, %s124
      %p136 = scmp.eq.s32.totalorder %s35, 2
      %p137 = por %p135, %p136
      %p139 = scmp.ne.s32.totalorder %s124, %s138
      %p140 = scmp.eq.s32.totalorder %s35, 0
      %p141 = por %p139, %p140
      %s143 = sadd.s32 %s142, 1
      %p146 = scmp.eq.s32.totalorder %s29, 2
      %p147 = scmp.ne.s32.totalorder %s142, %s144
      %p148 = scmp.eq.s32.totalorder %s29, 0
      %p149 = por %p147, %p148
      %p150 = scmp.ne.s32.totalorder %s142, %s144
      %p151 = scmp.eq.s32.totalorder %s34, 2
      %p152 = por %p150, %p151
      %p153 = scmp.ne.s32.totalorder %s144, %s145
      %p154 = scmp.eq.s32.totalorder %s34, 0
      %p155 = por %p153, %p154
      %p156 = scmp.ne.s32.totalorder %s144, %s145
      %p157 = scmp.eq.s32.totalorder %s35, 2
      %p158 = por %p156, %p157
      %p160 = scmp.ne.s32.totalorder %s145, %s159
      %p161 = scmp.eq.s32.totalorder %s35, 0
      %p162 = por %p160, %p161
      %s164 = sadd.s32 %s163, 1
      %p167 = scmp.eq.s32.totalorder %s29, 2
      %p168 = scmp.ne.s32.totalorder %s163, %s165
      %p169 = scmp.eq.s32.totalorder %s29, 0
      %p170 = por %p168, %p169
      %p171 = scmp.ne.s32.totalorder %s163, %s165
      %p172 = scmp.eq.s32.totalorder %s34, 2
      %p173 = por %p171, %p172
      %p174 = scmp.ne.s32.totalorder %s165, %s166
      %p175 = scmp.eq.s32.totalorder %s34, 0
      %p176 = por %p174, %p175
      %p177 = scmp.ne.s32.totalorder %s165, %s166
      %p178 = scmp.eq.s32.totalorder %s35, 2
      %p179 = por %p177, %p178
      %p181 = scmp.ne.s32.totalorder %s166, %s180
      %p182 = scmp.eq.s32.totalorder %s35, 0
      %p183 = por %p181, %p182
      %s185 = sadd.s32 %s184, 1
      %p188 = scmp.eq.s32.totalorder %s29, 2
      %p189 = scmp.ne.s32.totalorder %s184, %s186
      %p190 = scmp.eq.s32.totalorder %s29, 0
      %p191 = por %p189, %p190
      %p192 = scmp.ne.s32.totalorder %s184, %s186
      %p193 = scmp.eq.s32.totalorder %s34, 2
      %p194 = por %p192, %p193
      %p195 = scmp.ne.s32.totalorder %s186, %s187
      %p196 = scmp.eq.s32.totalorder %s34, 0
      %p197 = por %p195, %p196
      %p198 = scmp.ne.s32.totalorder %s186, %s187
      %p199 = scmp.eq.s32.totalorder %s35, 2
      %p200 = por %p198, %p199
      %p202 = scmp.ne.s32.totalorder %s187, %s201
      %p203 = scmp.eq.s32.totalorder %s35, 0
      %p204 = por %p202, %p203
      %s206 = sadd.s32 %s205, 1
      %p209 = scmp.eq.s32.totalorder %s29, 2
      %p210 = scmp.ne.s32.totalorder %s205, %s207
      %p211 = scmp.eq.s32.totalorder %s29, 0
      %p212 = por %p210, %p211
      %p213 = scmp.ne.s32.totalorder %s205, %s207
      %p214 = scmp.eq.s32.totalorder %s34, 2
      %p215 = por %p213, %p214
      %p216 = scmp.ne.s32.totalorder %s207, %s208
      %p217 = scmp.eq.s32.totalorder %s34, 0
      %p218 = por %p216, %p217
      %p219 = scmp.ne.s32.totalorder %s207, %s208
      %p220 = scmp.eq.s32.totalorder %s35, 2
      %p221 = por %p219, %p220
      %p223 = scmp.ne.s32.totalorder %s208, %s222
      %p224 = scmp.eq.s32.totalorder %s35, 0
      %p225 = por %p223, %p224
      %s227 = sadd.s32 %s226, 1
      %p230 = scmp.eq.s32.totalorder %s29, 2
      %p231 = scmp.ne.s32.totalorder %s226, %s228
      %p232 = scmp.eq.s32.totalorder %s29, 0
      %p233 = por %p231, %p232
      %p234 = scmp.ne.s32.totalorder %s226, %s228
      %p235 = scmp.eq.s32.totalorder %s34, 2
      %p236 = por %p234, %p235
      %p237 = scmp.ne.s32.totalorder %s228, %s229
      %p238 = scmp.eq.s32.totalorder %s34, 0
      %p239 = por %p237, %p238
      %p240 = scmp.ne.s32.totalorder %s228, %s229
      %p241 = scmp.eq.s32.totalorder %s35, 2
      %p242 = por %p240, %p241
      %p244 = scmp.ne.s32.totalorder %s229, %s243
      %p245 = scmp.eq.s32.totalorder %s35, 0
      %p246 = por %p244, %p245
      %s248 = sadd.s32 %s247, 1
      %p251 = scmp.eq.s32.totalorder %s29, 2
      %p252 = scmp.ne.s32.totalorder %s247, %s249
      %p253 = scmp.eq.s32.totalorder %s29, 0
      %p254 = por %p252, %p253
      %p255 = scmp.ne.s32.totalorder %s247, %s249
      %p256 = scmp.eq.s32.totalorder %s34, 2
      %p257 = por %p255, %p256
      %p258 = scmp.ne.s32.totalorder %s249, %s250
      %p259 = scmp.eq.s32.totalorder %s34, 0
      %p260 = por %p258, %p259
      %p261 = scmp.ne.s32.totalorder %s249, %s250
      %p262 = scmp.eq.s32.totalorder %s35, 2
      %p263 = por %p261, %p262
      %p265 = scmp.ne.s32.totalorder %s250, %s264
      %p266 = scmp.eq.s32.totalorder %s35, 0
      %p267 = por %p265, %p266
      %s269 = sadd.s32 %s268, 1
      %p272 = scmp.eq.s32.totalorder %s29, 2
      %p273 = scmp.ne.s32.totalorder %s268, %s270
      %p274 = scmp.eq.s32.totalorder %s29, 0
      %p275 = por %p273, %p274
      %p276 = scmp.ne.s32.totalorder %s268, %s270
      %p277 = scmp.eq.s32.totalorder %s34, 2
      %p278 = por %p276, %p277
      %p279 = scmp.ne.s32.totalorder %s270, %s271
      %p280 = scmp.eq.s32.totalorder %s34, 0
      %p281 = por %p279, %p280
      %p282 = scmp.ne.s32.totalorder %s270, %s271
      %p283 = scmp.eq.s32.totalorder %s35, 2
      %p284 = por %p282, %p283
      %p286 = scmp.ne.s32.totalorder %s271, %s285
      %p287 = scmp.eq.s32.totalorder %s35, 0
      %p288 = por %p286, %p287
      %p289 = scmp.eq.s32.totalorder %s36, 2
      %s290 = scalar_select %p289, %s37, 0
      %p291 = scmp.eq.s32.totalorder %s48, 2
      %s292 = scalar_select %p291, %s44, 0
      %s293 = ssub.s32 %s290, %s292
      %p294 = scmp.eq.s32.totalorder %s293, 0
      %s296 = sadd.s32 %s295, 1
      %s297 = scalar_select %p294, %s295, %s296
      %p300 = pneg %p294
      %p301 = scmp.eq.s32.totalorder %s29, 2
      %p302 = por %p300, %p301
      %p303 = scmp.ne.s32.totalorder %s295, %s298
      %p304 = scmp.eq.s32.totalorder %s29, 0
      %p305 = por %p303, %p304
      %p306 = scmp.ne.s32.totalorder %s295, %s298
      %p307 = scmp.eq.s32.totalorder %s34, 2
      %p308 = por %p306, %p307
      %p309 = scmp.ne.s32.totalorder %s298, %s299
      %p310 = scmp.eq.s32.totalorder %s34, 0
      %p311 = por %p309, %p310
      %p312 = scmp.ne.s32.totalorder %s298, %s299
      %p313 = scmp.eq.s32.totalorder %s35, 2
      %p314 = por %p312, %p313
      %p316 = scmp.ne.s32.totalorder %s299, %s315
      %p317 = scmp.eq.s32.totalorder %s35, 0
      %p318 = por %p316, %p317
      %p319 = scmp.le.s32.totalorder 1, %s29
      %p320 = scmp.lt.s32.totalorder %s29, 4
      %p321 = pnand %p319, %p320
      %p322 = pneg %p321
      // Predicated region
      $region9: #{tpu_custom_call.1} parent=5 // pred_check
        _
      $region10: #{tpu_custom_call.1} parent=5 // pred_check_branch
        %324 = sbr.rel (%p321) target = $region12
      $region11: #{tpu_custom_call.1} parent=5 // pred_region
        %s325 = ssub.s32 %s29, 1
        // Predicated region
        $region13: #{tpu_custom_call.1} parent=11 // pred_check
          %p326 = pneg %p92
        $region14: #{tpu_custom_call.1} parent=11 // pred_check_branch
          %328 = sbr.rel (%p326) target = $region16
        $region15: #{tpu_custom_call.1} parent=11 // pred_region
          %s330 = ssub.s32 16, 16
          %331 = vsyncadd [#allocation11], %s330
          %s333 = sshll.u32 %s1, 4
          %s334 = int_to_ptr.vmem [resolvable:$true] %s333
          %336 = dma.vmem_to_smem %s334, 16, [#allocation12], [#allocation11]
        $region16: #{tpu_custom_call.1} parent=11 // pred_fallthru
          _
        // Predicated region
        $region17: #{tpu_custom_call.1} parent=11 // pred_check
          %p337 = pneg %p113
        $region18: #{tpu_custom_call.1} parent=11 // pred_check_branch
          %339 = sbr.rel (%p337) target = $region20
        $region19: #{tpu_custom_call.1} parent=11 // pred_region
          %s341 = ssub.s32 16, 16
          %342 = vsyncadd [#allocation14], %s341
          %s344 = sshll.u32 %s2, 4
          %s345 = int_to_ptr.vmem [resolvable:$true] %s344
          %347 = dma.vmem_to_smem %s345, 16, [#allocation13], [#allocation14]
        $region20: #{tpu_custom_call.1} parent=11 // pred_fallthru
          _
        // Predicated region
        $region21: #{tpu_custom_call.1} parent=11 // pred_check
          %p348 = pneg %p134
        $region22: #{tpu_custom_call.1} parent=11 // pred_check_branch
          %350 = sbr.rel (%p348) target = $region24
        $region23: #{tpu_custom_call.1} parent=11 // pred_region
          %s352 = ssub.s32 16, 16
          %353 = vsyncadd [#allocation14], %s352
          %s355 = sshll.u32 %s3, 4
          %s356 = int_to_ptr.vmem [resolvable:$true] %s355
          %358 = dma.vmem_to_smem %s356, 16, [#allocation15], [#allocation14]
        $region24: #{tpu_custom_call.1} parent=11 // pred_fallthru
          _
        // Predicated region
        $region25: #{tpu_custom_call.1} parent=11 // pred_check
          %p359 = pneg %p155
        $region26: #{tpu_custom_call.1} parent=11 // pred_check_branch
          %361 = sbr.rel (%p359) target = $region28
        $region27: #{tpu_custom_call.1} parent=11 // pred_region
          %s363 = ssub.s32 16, 16
          %364 = vsyncadd [#allocation17], %s363
          %s366 = sshll.u32 %s4, 4
          %s367 = int_to_ptr.vmem [resolvable:$true] %s366
          %369 = dma.vmem_to_smem %s367, 16, [#allocation16], [#allocation17]
        $region28: #{tpu_custom_call.1} parent=11 // pred_fallthru
          _
        // Predicated region
        $region29: #{tpu_custom_call.1} parent=11 // pred_check
          %p370 = pneg %p176
        $region30: #{tpu_custom_call.1} parent=11 // pred_check_branch
          %372 = sbr.rel (%p370) target = $region32
        $region31: #{tpu_custom_call.1} parent=11 // pred_region
          %s374 = ssub.s32 16, 16
          %375 = vsyncadd [#allocation17], %s374
          %s377 = sshll.u32 %s5, 4
          %s378 = int_to_ptr.vmem [resolvable:$true] %s377
          %380 = dma.vmem_to_smem %s378, 16, [#allocation18], [#allocation17]
        $region32: #{tpu_custom_call.1} parent=11 // pred_fallthru
          _
        // Predicated region
        $region33: #{tpu_custom_call.1} parent=11 // pred_check
          %p381 = pneg %p197
        $region34: #{tpu_custom_call.1} parent=11 // pred_check_branch
          %383 = sbr.rel (%p381) target = $region36
        $region35: #{tpu_custom_call.1} parent=11 // pred_region
          %s385 = ssub.s32 16, 16
          %386 = vsyncadd [#allocation20], %s385
          %s388 = sshll.u32 %s6, 4
          %s389 = int_to_ptr.vmem [resolvable:$true] %s388
          %391 = dma.vmem_to_smem %s389, 16, [#allocation19], [#allocation20]
        $region36: #{tpu_custom_call.1} parent=11 // pred_fallthru
          _
        // Predicated region
        $region37: #{tpu_custom_call.1} parent=11 // pred_check
          %p392 = pneg %p218
        $region38: #{tpu_custom_call.1} parent=11 // pred_check_branch
          %394 = sbr.rel (%p392) target = $region40
        $region39: #{tpu_custom_call.1} parent=11 // pred_region
          %s396 = ssub.s32 16, 16
          %397 = vsyncadd [#allocation20], %s396
          %s399 = sshll.u32 %s7, 4
          %s400 = int_to_ptr.vmem [resolvable:$true] %s399
          %402 = dma.vmem_to_smem %s400, 16, [#allocation21], [#allocation20]
        $region40: #{tpu_custom_call.1} parent=11 // pred_fallthru
          _
        // Predicated region
        $region41: #{tpu_custom_call.1} parent=11 // pred_check
          %p403 = pneg %p239
        $region42: #{tpu_custom_call.1} parent=11 // pred_check_branch
          %405 = sbr.rel (%p403) target = $region44
        $region43: #{tpu_custom_call.1} parent=11 // pred_region
          %s407 = ssub.s32 16, 16
          %408 = vsyncadd [#allocation23], %s407
          %s410 = sshll.u32 %s8, 4
          %s411 = int_to_ptr.vmem [resolvable:$true] %s410
          %413 = dma.vmem_to_smem %s411, 16, [#allocation22], [#allocation23]
        $region44: #{tpu_custom_call.1} parent=11 // pred_fallthru
          _
        // Predicated region
        $region45: #{tpu_custom_call.1} parent=11 // pred_check
          %p414 = pneg %p260
        $region46: #{tpu_custom_call.1} parent=11 // pred_check_branch
          %416 = sbr.rel (%p414) target = $region48
        $region47: #{tpu_custom_call.1} parent=11 // pred_region
          %s418 = ssub.s32 16, 16
          %419 = vsyncadd [#allocation23], %s418
          %s421 = sshll.u32 %s9, 4
          %s422 = int_to_ptr.vmem [resolvable:$true] %s421
          %424 = dma.vmem_to_smem %s422, 16, [#allocation24], [#allocation23]
        $region48: #{tpu_custom_call.1} parent=11 // pred_fallthru
          _
        // Predicated region
        $region49: #{tpu_custom_call.1} parent=11 // pred_check
          %p425 = pneg %p281
        $region50: #{tpu_custom_call.1} parent=11 // pred_check_branch
          %427 = sbr.rel (%p425) target = $region52
        $region51: #{tpu_custom_call.1} parent=11 // pred_region
          _
        $region52: #{tpu_custom_call.1} parent=11 // pred_fallthru
          _
      $region12: #{tpu_custom_call.1} parent=5 // pred_fallthru
        _
      %p428 = scmp.lt.s32.totalorder %s29, 3
      // Predicated region
      $region53: #{tpu_custom_call.1} parent=5 // pred_check
        %p429 = pneg %p428
      $region54: #{tpu_custom_call.1} parent=5 // pred_check_branch
        %431 = sbr.rel (%p429) target = $region56
      $region55: #{tpu_custom_call.1} parent=5 // pred_region
        // Predicated region
        $region57: #{tpu_custom_call.1} parent=55 // pred_check
          %p432 = pneg %p65
        $region58: #{tpu_custom_call.1} parent=55 // pred_check_branch
          %434 = sbr.rel (%p432) target = $region60
        $region59: #{tpu_custom_call.1} parent=55 // pred_region
          %s435 = sand.u32 %s55, 1
          %s436 = scalar_lea.sflag [#allocation9], %s435
          %s437 = sand.u32 %s55, 1
          %s438 = smul.addr %s437, 120
          %s439 = scalar_lea.vmem [#allocation8], %s438
          %p440 = scmp.eq.s32.totalorder %s36, 0
          %s441 = scalar_select %p440, %s37, 0
          %s443 = ssub.s32 1920, 1920
          %444 = vsyncadd %s436, %s443
          %s445 = smul.addr %s441, 128
          %s446 = scalar_lea.hbm %s0, %s445
          %s447 = sshll.u32 %s439, 4
          %s448 = int_to_ptr.vmem [resolvable:$true] %s447
          %453 = dma.hbm_to_vmem [thread:$0]  %s446, 1920, %s448, %s436, 128, 128, 8
        $region60: #{tpu_custom_call.1} parent=55 // pred_fallthru
          _
      $region56: #{tpu_custom_call.1} parent=5 // pred_fallthru
        _
      %p454 = scmp.le.s32.totalorder 1, %s29
      %p455 = scmp.lt.s32.totalorder %s29, 4
      %p456 = pnand %p454, %p455
      %p457 = pneg %p456
      // Predicated region
      $region61: #{tpu_custom_call.1} parent=5 // pred_check
        _
      $region62: #{tpu_custom_call.1} parent=5 // pred_check_branch
        %459 = sbr.rel (%p456) target = $region64
      $region63: #{tpu_custom_call.1} parent=5 // pred_region
        %s460 = ssub.s32 %s29, 1
        %s461 = sand.u32 %s58, 1
        %s462 = scalar_lea.sflag [#allocation9], %s461
        %s463 = sand.u32 %s58, 1
        %s464 = smul.addr %s463, 120
        %s465 = scalar_lea.vmem [#allocation8], %s464
        // Predicated region
        $region65: #{tpu_custom_call.1} parent=63 // pred_check
          %p466 = pneg %p71
        $region66: #{tpu_custom_call.1} parent=63 // pred_check_branch
          %468 = sbr.rel (%p466) target = $region68
        $region67: #{tpu_custom_call.1} parent=63 // pred_region
          %469 = dma.done %s462, 1920
        $region68: #{tpu_custom_call.1} parent=63 // pred_fallthru
          _
        // Predicated region
        $region69: #{tpu_custom_call.1} parent=63 // pred_check
          %p470 = pneg %p92
        $region70: #{tpu_custom_call.1} parent=63 // pred_check_branch
          %472 = sbr.rel (%p470) target = $region72
        $region71: #{tpu_custom_call.1} parent=63 // pred_region
          %473 = dma.done [#allocation11], 16
        $region72: #{tpu_custom_call.1} parent=63 // pred_fallthru
          _
        // Predicated region
        $region73: #{tpu_custom_call.1} parent=63 // pred_check
          %p474 = pneg %p113
        $region74: #{tpu_custom_call.1} parent=63 // pred_check_branch
          %476 = sbr.rel (%p474) target = $region76
        $region75: #{tpu_custom_call.1} parent=63 // pred_region
          %477 = dma.done [#allocation14], 16
        $region76: #{tpu_custom_call.1} parent=63 // pred_fallthru
          _
        // Predicated region
        $region77: #{tpu_custom_call.1} parent=63 // pred_check
          %p478 = pneg %p134
        $region78: #{tpu_custom_call.1} parent=63 // pred_check_branch
          %480 = sbr.rel (%p478) target = $region80
        $region79: #{tpu_custom_call.1} parent=63 // pred_region
          %481 = dma.done [#allocation14], 16
        $region80: #{tpu_custom_call.1} parent=63 // pred_fallthru
          _
        // Predicated region
        $region81: #{tpu_custom_call.1} parent=63 // pred_check
          %p482 = pneg %p155
        $region82: #{tpu_custom_call.1} parent=63 // pred_check_branch
          %484 = sbr.rel (%p482) target = $region84
        $region83: #{tpu_custom_call.1} parent=63 // pred_region
          %485 = dma.done [#allocation17], 16
        $region84: #{tpu_custom_call.1} parent=63 // pred_fallthru
          _
        // Predicated region
        $region85: #{tpu_custom_call.1} parent=63 // pred_check
          %p486 = pneg %p176
        $region86: #{tpu_custom_call.1} parent=63 // pred_check_branch
          %488 = sbr.rel (%p486) target = $region88
        $region87: #{tpu_custom_call.1} parent=63 // pred_region
          %489 = dma.done [#allocation17], 16
        $region88: #{tpu_custom_call.1} parent=63 // pred_fallthru
          _
        // Predicated region
        $region89: #{tpu_custom_call.1} parent=63 // pred_check
          %p490 = pneg %p197
        $region90: #{tpu_custom_call.1} parent=63 // pred_check_branch
          %492 = sbr.rel (%p490) target = $region92
        $region91: #{tpu_custom_call.1} parent=63 // pred_region
          %493 = dma.done [#allocation20], 16
        $region92: #{tpu_custom_call.1} parent=63 // pred_fallthru
          _
        // Predicated region
        $region93: #{tpu_custom_call.1} parent=63 // pred_check
          %p494 = pneg %p218
        $region94: #{tpu_custom_call.1} parent=63 // pred_check_branch
          %496 = sbr.rel (%p494) target = $region96
        $region95: #{tpu_custom_call.1} parent=63 // pred_region
          %497 = dma.done [#allocation20], 16
        $region96: #{tpu_custom_call.1} parent=63 // pred_fallthru
          _
        // Predicated region
        $region97: #{tpu_custom_call.1} parent=63 // pred_check
          %p498 = pneg %p239
        $region98: #{tpu_custom_call.1} parent=63 // pred_check_branch
          %500 = sbr.rel (%p498) target = $region100
        $region99: #{tpu_custom_call.1} parent=63 // pred_region
          %501 = dma.done [#allocation23], 16
        $region100: #{tpu_custom_call.1} parent=63 // pred_fallthru
          _
        // Predicated region
        $region101: #{tpu_custom_call.1} parent=63 // pred_check
          %p502 = pneg %p260
        $region102: #{tpu_custom_call.1} parent=63 // pred_check_branch
          %504 = sbr.rel (%p502) target = $region104
        $region103: #{tpu_custom_call.1} parent=63 // pred_region
          %505 = dma.done [#allocation23], 16
        $region104: #{tpu_custom_call.1} parent=63 // pred_fallthru
          _
        %506 = sfence
        %s507 = sand.u32 %s58, 1
        %s508 = scalar_lea.sflag [#allocation9], %s507
        %s509 = sand.u32 %s58, 1
        %s510 = smul.addr %s509, 120
        %s511 = scalar_lea.vmem [#allocation8], %s510
        %p512 = pneg %p71
        %p513 = pneg %p68
        %p514 = pneg %p92
        %p515 = pneg %p89
        %p516 = pneg %p113
        %p517 = pneg %p110
        %p518 = pneg %p134
        %p519 = pneg %p131
        %p520 = pneg %p155
        %p521 = pneg %p152
        %p522 = pneg %p176
        %p523 = pneg %p173
        %p524 = pneg %p197
        %p525 = pneg %p194
        %p526 = pneg %p218
        %p527 = pneg %p215
        %p528 = pneg %p239
        %p529 = pneg %p236
        %p530 = pneg %p260
        %p531 = pneg %p257
        %p532 = pneg %p281
        %p533 = pneg %p278
        %p534 = pneg %p311
        %p535 = pneg %p308
        %s536 = sand.u32 %s298, 1
        %s537 = scalar_lea.sflag [#allocation10], %s536
        %s538 = sand.u32 %s298, 1
        %s539 = smul.addr %s538, 8
        %s540 = scalar_lea.vmem [#allocation25], %s539
        %p541 = scmp.eq.s32.totalorder %s38, 0
        %s542 = scalar_select %p541, %s39, 0
        %p543 = scmp.eq.s32.totalorder %s38, 2
        %s544 = scalar_select %p543, %s39, 0
        %s545 = smul.u32 %s39, 128
        %p546 = scmp.eq.s32.totalorder %s38, 0
        %p547 = scmp.eq.s32.totalorder %s39, 0
        %p548 = pnand %p546, %p547
        %p549 = pneg %p548
        // Predicated region
        $region105: #{tpu_custom_call.1} parent=63 // pred_check
          _
        $region106: #{tpu_custom_call.1} parent=63 // pred_check_branch
          %551 = sbr.rel (%p548) target = $region108
        $region107: #{tpu_custom_call.1} parent=63 // pred_region
          %s552 = scalar_lea.smem [#allocation3], 0
          %553 = sst [smem:[%s552]] 0.0
          %s554 = scalar_lea.smem [#allocation4], 0
          %555 = sst [smem:[%s554]] 0.0
          %s556 = scalar_lea.smem [#allocation5], 0
          %557 = sst [smem:[%s556]] 0.0
          %s558 = scalar_lea.smem [#allocation6], 0
          %559 = sst [smem:[%s558]] 0.0
          %s560 = scalar_lea.smem [#allocation3], 1
          %561 = sst [smem:[%s560]] 0.0
          %s562 = scalar_lea.smem [#allocation4], 1
          %563 = sst [smem:[%s562]] 0.0
          %s564 = scalar_lea.smem [#allocation5], 1
          %565 = sst [smem:[%s564]] 0.0
          %s566 = scalar_lea.smem [#allocation6], 1
          %567 = sst [smem:[%s566]] 0.0
          %s568 = scalar_lea.smem [#allocation3], 2
          %569 = sst [smem:[%s568]] 0.0
          %s570 = scalar_lea.smem [#allocation4], 2
          %571 = sst [smem:[%s570]] 0.0
          %s572 = scalar_lea.smem [#allocation5], 2
          %573 = sst [smem:[%s572]] 0.0
          %s574 = scalar_lea.smem [#allocation6], 2
          %575 = sst [smem:[%s574]] 0.0
          %s576 = scalar_lea.smem [#allocation3], 3
          %577 = sst [smem:[%s576]] 0.0
          %s578 = scalar_lea.smem [#allocation4], 3
          %579 = sst [smem:[%s578]] 0.0
          %s580 = scalar_lea.smem [#allocation5], 3
          %581 = sst [smem:[%s580]] 0.0
          %s582 = scalar_lea.smem [#allocation6], 3
          %583 = sst [smem:[%s582]] 0.0
        $region108: #{tpu_custom_call.1} parent=63 // pred_fallthru
          _
        // Predicated region
        $region109: #{tpu_custom_call.1} parent=63 // pred_check
          %p584 = pneg %p546
        $region110: #{tpu_custom_call.1} parent=63 // pred_check_branch
          %586 = sbr.rel (%p584) target = $region112
        $region111: #{tpu_custom_call.1} parent=63 // pred_region
          %v587 = vlaneseq
          %v588 = vshrl.u32 %v587, 7
          %v589 = vlaneseq
          %v590 = vand.u32 %v589, 127
          %v591 = vstv %s545
          %v592 = vadd.s32 %v590, %v591
          %v593 = vmul.u32 %v592, 8
          %v594 = vadd.s32 %v593, %v588
          %vm595 = vcmp.lt.s32.totalorder %v594, 8
          %v596 = vsel %vm595, 1, 0
          %v597 = vcvt.s32.f32 %v596
          %v598 = vld [vmem:[%s465] sm:$0xff]
          %s599 = sld [smem:[#allocation12]]
          %v600 = vstv %s599
          %v601 = vmul.f32 %v598, %v600
          %s602 = sld [smem:[#allocation12 + $0x1]]
          %v603 = vstv %s602
          %v604 = vmul.f32 %v598, %v603
          %s605 = sld [smem:[#allocation12 + $0x2]]
          %v606 = vstv %s605
          %v607 = vmul.f32 %v598, %v606
          %s608 = sld [smem:[#allocation12 + $0x3]]
          %v609 = vstv %s608
          %v610 = vmul.f32 %v598, %v609
          %v611 = vld [vmem:[%s465 + $0x8] sm:$0xff]
          %s612 = sld [smem:[#allocation12 + $0x4]]
          %v613 = vstv %s612
          %v614 = vmul.f32 %v611, %v613
          %v615 = vadd.f32 %v601, %v614
          %s616 = sld [smem:[#allocation12 + $0x5]]
          %v617 = vstv %s616
          %v618 = vmul.f32 %v611, %v617
          %v619 = vadd.f32 %v604, %v618
          %s620 = sld [smem:[#allocation12 + $0x6]]
          %v621 = vstv %s620
          %v622 = vmul.f32 %v611, %v621
          %v623 = vadd.f32 %v607, %v622
          %s624 = sld [smem:[#allocation12 + $0x7]]
          %v625 = vstv %s624
          %v626 = vmul.f32 %v611, %v625
          %v627 = vadd.f32 %v610, %v626
          %v628 = vld [vmem:[%s465 + $0x10] sm:$0xff]
          %s629 = sld [smem:[#allocation12 + $0x8]]
          %v630 = vstv %s629
          %v631 = vmul.f32 %v628, %v630
          %v632 = vadd.f32 %v615, %v631
          %s633 = sld [smem:[#allocation12 + $0x9]]
          %v634 = vstv %s633
          %v635 = vmul.f32 %v628, %v634
          %v636 = vadd.f32 %v619, %v635
          %s637 = sld [smem:[#allocation12 + $0xa]]
          %v638 = vstv %s637
          %v639 = vmul.f32 %v628, %v638
          %v640 = vadd.f32 %v623, %v639
          %s641 = sld [smem:[#allocation12 + $0xb]]
          %v642 = vstv %s641
          %v643 = vmul.f32 %v628, %v642
          %v644 = vadd.f32 %v627, %v643
          %v645 = vld [vmem:[%s465 + $0x18] sm:$0xff]
          %s646 = sld [smem:[#allocation12 + $0xc]]
          %v647 = vstv %s646
          %v648 = vmul.f32 %v645, %v647
          %v649 = vadd.f32 %v632, %v648
          %s650 = sld [smem:[#allocation12 + $0xd]]
          %v651 = vstv %s650
          %v652 = vmul.f32 %v645, %v651
          %v653 = vadd.f32 %v636, %v652
          %s654 = sld [smem:[#allocation12 + $0xe]]
          %v655 = vstv %s654
          %v656 = vmul.f32 %v645, %v655
          %v657 = vadd.f32 %v640, %v656
          %s658 = sld [smem:[#allocation12 + $0xf]]
          %v659 = vstv %s658
          %v660 = vmul.f32 %v645, %v659
          %v661 = vadd.f32 %v644, %v660
          %v662 = vld [vmem:[%s465 + $0x20] sm:$0xff]
          %s663 = sld [smem:[#allocation12 + $0x10]]
          %v664 = vstv %s663
          %v665 = vmul.f32 %v662, %v664
          %v666 = vadd.f32 %v649, %v665
          %s667 = sld [smem:[#allocation12 + $0x11]]
          %v668 = vstv %s667
          %v669 = vmul.f32 %v662, %v668
          %v670 = vadd.f32 %v653, %v669
          %s671 = sld [smem:[#allocation12 + $0x12]]
          %v672 = vstv %s671
          %v673 = vmul.f32 %v662, %v672
          %v674 = vadd.f32 %v657, %v673
          %s675 = sld [smem:[#allocation12 + $0x13]]
          %v676 = vstv %s675
          %v677 = vmul.f32 %v662, %v676
          %v678 = vadd.f32 %v661, %v677
          %v679 = vld [vmem:[%s465 + $0x28] sm:$0xff]
          %s680 = sld [smem:[#allocation12 + $0x14]]
          %v681 = vstv %s680
          %v682 = vmul.f32 %v679, %v681
          %v683 = vadd.f32 %v666, %v682
          %s684 = sld [smem:[#allocation12 + $0x15]]
          %v685 = vstv %s684
          %v686 = vmul.f32 %v679, %v685
          %v687 = vadd.f32 %v670, %v686
          %s688 = sld [smem:[#allocation12 + $0x16]]
          %v689 = vstv %s688
          %v690 = vmul.f32 %v679, %v689
          %v691 = vadd.f32 %v674, %v690
          %s692 = sld [smem:[#allocation12 + $0x17]]
          %v693 = vstv %s692
          %v694 = vmul.f32 %v679, %v693
          %v695 = vadd.f32 %v678, %v694
          %v696 = vld [vmem:[%s465 + $0x30] sm:$0xff]
          %s697 = sld [smem:[#allocation12 + $0x18]]
          %v698 = vstv %s697
          %v699 = vmul.f32 %v696, %v698
          %v700 = vadd.f32 %v683, %v699
          %s701 = sld [smem:[#allocation12 + $0x19]]
          %v702 = vstv %s701
          %v703 = vmul.f32 %v696, %v702
          %v704 = vadd.f32 %v687, %v703
          %s705 = sld [smem:[#allocation12 + $0x1a]]
          %v706 = vstv %s705
          %v707 = vmul.f32 %v696, %v706
          %v708 = vadd.f32 %v691, %v707
          %s709 = sld [smem:[#allocation12 + $0x1b]]
          %v710 = vstv %s709
          %v711 = vmul.f32 %v696, %v710
          %v712 = vadd.f32 %v695, %v711
          %v713 = vld [vmem:[%s465 + $0x38] sm:$0xff]
          %s714 = sld [smem:[#allocation12 + $0x1c]]
          %v715 = vstv %s714
          %v716 = vmul.f32 %v713, %v715
          %v717 = vadd.f32 %v700, %v716
          %s718 = sld [smem:[#allocation12 + $0x1d]]
          %v719 = vstv %s718
          %v720 = vmul.f32 %v713, %v719
          %v721 = vadd.f32 %v704, %v720
          %s722 = sld [smem:[#allocation12 + $0x1e]]
          %v723 = vstv %s722
          %v724 = vmul.f32 %v713, %v723
          %v725 = vadd.f32 %v708, %v724
          %s726 = sld [smem:[#allocation12 + $0x1f]]
          %v727 = vstv %s726
          %v728 = vmul.f32 %v713, %v727
          %v729 = vadd.f32 %v712, %v728
          %v730 = vld [vmem:[%s465 + $0x40] sm:$0xff]
          %s731 = sld [smem:[#allocation12 + $0x20]]
          %v732 = vstv %s731
          %v733 = vmul.f32 %v730, %v732
          %v734 = vadd.f32 %v717, %v733
          %s735 = sld [smem:[#allocation12 + $0x21]]
          %v736 = vstv %s735
          %v737 = vmul.f32 %v730, %v736
          %v738 = vadd.f32 %v721, %v737
          %s739 = sld [smem:[#allocation12 + $0x22]]
          %v740 = vstv %s739
          %v741 = vmul.f32 %v730, %v740
          %v742 = vadd.f32 %v725, %v741
          %s743 = sld [smem:[#allocation12 + $0x23]]
          %v744 = vstv %s743
          %v745 = vmul.f32 %v730, %v744
          %v746 = vadd.f32 %v729, %v745
          %v747 = vld [vmem:[%s465 + $0x48] sm:$0xff]
          %s748 = sld [smem:[#allocation12 + $0x24]]
          %v749 = vstv %s748
          %v750 = vmul.f32 %v747, %v749
          %v751 = vadd.f32 %v734, %v750
          %s752 = sld [smem:[#allocation12 + $0x25]]
          %v753 = vstv %s752
          %v754 = vmul.f32 %v747, %v753
          %v755 = vadd.f32 %v738, %v754
          %s756 = sld [smem:[#allocation12 + $0x26]]
          %v757 = vstv %s756
          %v758 = vmul.f32 %v747, %v757
          %v759 = vadd.f32 %v742, %v758
          %s760 = sld [smem:[#allocation12 + $0x27]]
          %v761 = vstv %s760
          %v762 = vmul.f32 %v747, %v761
          %v763 = vadd.f32 %v746, %v762
          %v764 = vld [vmem:[%s465 + $0x50] sm:$0xff]
          %s765 = sld [smem:[#allocation12 + $0x28]]
          %v766 = vstv %s765
          %v767 = vmul.f32 %v764, %v766
          %v768 = vadd.f32 %v751, %v767
          %s769 = sld [smem:[#allocation12 + $0x29]]
          %v770 = vstv %s769
          %v771 = vmul.f32 %v764, %v770
          %v772 = vadd.f32 %v755, %v771
          %s773 = sld [smem:[#allocation12 + $0x2a]]
          %v774 = vstv %s773
          %v775 = vmul.f32 %v764, %v774
          %v776 = vadd.f32 %v759, %v775
          %s777 = sld [smem:[#allocation12 + $0x2b]]
          %v778 = vstv %s777
          %v779 = vmul.f32 %v764, %v778
          %v780 = vadd.f32 %v763, %v779
          %v781 = vld [vmem:[%s465 + $0x58] sm:$0xff]
          %s782 = sld [smem:[#allocation12 + $0x2c]]
          %v783 = vstv %s782
          %v784 = vmul.f32 %v781, %v783
          %v785 = vadd.f32 %v768, %v784
          %s786 = sld [smem:[#allocation12 + $0x2d]]
          %v787 = vstv %s786
          %v788 = vmul.f32 %v781, %v787
          %v789 = vadd.f32 %v772, %v788
          %s790 = sld [smem:[#allocation12 + $0x2e]]
          %v791 = vstv %s790
          %v792 = vmul.f32 %v781, %v791
          %v793 = vadd.f32 %v776, %v792
          %s794 = sld [smem:[#allocation12 + $0x2f]]
          %v795 = vstv %s794
          %v796 = vmul.f32 %v781, %v795
          %v797 = vadd.f32 %v780, %v796
          %v798 = vld [vmem:[%s465 + $0x60] sm:$0xff]
          %s799 = sld [smem:[#allocation12 + $0x30]]
          %v800 = vstv %s799
          %v801 = vmul.f32 %v798, %v800
          %v802 = vadd.f32 %v785, %v801
          %s803 = sld [smem:[#allocation12 + $0x31]]
          %v804 = vstv %s803
          %v805 = vmul.f32 %v798, %v804
          %v806 = vadd.f32 %v789, %v805
          %s807 = sld [smem:[#allocation12 + $0x32]]
          %v808 = vstv %s807
          %v809 = vmul.f32 %v798, %v808
          %v810 = vadd.f32 %v793, %v809
          %s811 = sld [smem:[#allocation12 + $0x33]]
          %v812 = vstv %s811
          %v813 = vmul.f32 %v798, %v812
          %v814 = vadd.f32 %v797, %v813
          %v815 = vld [vmem:[%s465 + $0x68] sm:$0xff]
          %s816 = sld [smem:[#allocation12 + $0x34]]
          %v817 = vstv %s816
          %v818 = vmul.f32 %v815, %v817
          %v819 = vadd.f32 %v802, %v818
          %s820 = sld [smem:[#allocation12 + $0x35]]
          %v821 = vstv %s820
          %v822 = vmul.f32 %v815, %v821
          %v823 = vadd.f32 %v806, %v822
          %s824 = sld [smem:[#allocation12 + $0x36]]
          %v825 = vstv %s824
          %v826 = vmul.f32 %v815, %v825
          %v827 = vadd.f32 %v810, %v826
          %s828 = sld [smem:[#allocation12 + $0x37]]
          %v829 = vstv %s828
          %v830 = vmul.f32 %v815, %v829
          %v831 = vadd.f32 %v814, %v830
          %v832 = vld [vmem:[%s465 + $0x70] sm:$0xff]
          %s833 = sld [smem:[#allocation12 + $0x38]]
          %v834 = vstv %s833
          %v835 = vmul.f32 %v832, %v834
          %v836 = vadd.f32 %v819, %v835
          %s837 = sld [smem:[#allocation12 + $0x39]]
          %v838 = vstv %s837
          %v839 = vmul.f32 %v832, %v838
          %v840 = vadd.f32 %v823, %v839
          %s841 = sld [smem:[#allocation12 + $0x3a]]
          %v842 = vstv %s841
          %v843 = vmul.f32 %v832, %v842
          %v844 = vadd.f32 %v827, %v843
          %s845 = sld [smem:[#allocation12 + $0x3b]]
          %v846 = vstv %s845
          %v847 = vmul.f32 %v832, %v846
          %v848 = vadd.f32 %v831, %v847
          %s849 = sld [smem:[#allocation13]]
          %v850 = vstv %s849
          %v851 = vadd.f32 %v836, %v850
          %s852 = sshra.s32 %s545, 7
          %s853 = sand.u32 %s545, 127
          %s854 = scalar_lea.vmem [#allocation2], %s852
          %855 = vst [vmem:[%s854] sm:$0xff] %v851
          %s856 = sld [smem:[#allocation3]]
          %v857 = vmul.f32 %v851, %v597
          %858 = vadd.xlane.f32.xlu0 %v857
          %v859 = vpop.xlane.xlu0 %858
          %v860 = vrot.slane %v859, 4
          %v861 = vadd.f32 %v859, %v860
          %v862 = vrot.slane %v861, 2
          %v863 = vadd.f32 %v861, %v862
          %v864 = vrot.slane %v863, 1
          %v865 = vadd.f32 %v863, %v864
          %s866 = vtos %v865
          %s867 = sadd.f32 %s856, %s866
          %s868 = scalar_lea.smem [#allocation3], 0
          %869 = sst [smem:[%s868]] %s867
          %s870 = sld [smem:[#allocation4]]
          %v871 = vmul.f32 %v851, %v851
          %v872 = vmul.f32 %v871, %v597
          %873 = vadd.xlane.f32.xlu0 %v872
          %v874 = vpop.xlane.xlu0 %873
          %v875 = vrot.slane %v874, 4
          %v876 = vadd.f32 %v874, %v875
          %v877 = vrot.slane %v876, 2
          %v878 = vadd.f32 %v876, %v877
          %v879 = vrot.slane %v878, 1
          %v880 = vadd.f32 %v878, %v879
          %s881 = vtos %v880
          %s882 = sadd.f32 %s870, %s881
          %s883 = scalar_lea.smem [#allocation4], 0
          %884 = sst [smem:[%s883]] %s882
          %s885 = sld [smem:[#allocation13 + $0x1]]
          %v886 = vstv %s885
          %v887 = vadd.f32 %v840, %v886
          %888 = vst [vmem:[%s854 + $0x8] sm:$0xff] %v887
          %s889 = sld [smem:[#allocation3 + $0x1]]
          %v890 = vmul.f32 %v887, %v597
          %891 = vadd.xlane.f32.xlu0 %v890
          %v892 = vpop.xlane.xlu0 %891
          %v893 = vrot.slane %v892, 4
          %v894 = vadd.f32 %v892, %v893
          %v895 = vrot.slane %v894, 2
          %v896 = vadd.f32 %v894, %v895
          %v897 = vrot.slane %v896, 1
          %v898 = vadd.f32 %v896, %v897
          %s899 = vtos %v898
          %s900 = sadd.f32 %s889, %s899
          %s901 = scalar_lea.smem [#allocation3], 1
          %902 = sst [smem:[%s901]] %s900
          %s903 = sld [smem:[#allocation4 + $0x1]]
          %v904 = vmul.f32 %v887, %v887
          %v905 = vmul.f32 %v904, %v597
          %906 = vadd.xlane.f32.xlu0 %v905
          %v907 = vpop.xlane.xlu0 %906
          %v908 = vrot.slane %v907, 4
          %v909 = vadd.f32 %v907, %v908
          %v910 = vrot.slane %v909, 2
          %v911 = vadd.f32 %v909, %v910
          %v912 = vrot.slane %v911, 1
          %v913 = vadd.f32 %v911, %v912
          %s914 = vtos %v913
          %s915 = sadd.f32 %s903, %s914
          %s916 = scalar_lea.smem [#allocation4], 1
          %917 = sst [smem:[%s916]] %s915
          %s918 = sld [smem:[#allocation13 + $0x2]]
          %v919 = vstv %s918
          %v920 = vadd.f32 %v844, %v919
          %921 = vst [vmem:[%s854 + $0x10] sm:$0xff] %v920
          %s922 = sld [smem:[#allocation3 + $0x2]]
          %v923 = vmul.f32 %v920, %v597
          %924 = vadd.xlane.f32.xlu0 %v923
          %v925 = vpop.xlane.xlu0 %924
          %v926 = vrot.slane %v925, 4
          %v927 = vadd.f32 %v925, %v926
          %v928 = vrot.slane %v927, 2
          %v929 = vadd.f32 %v927, %v928
          %v930 = vrot.slane %v929, 1
          %v931 = vadd.f32 %v929, %v930
          %s932 = vtos %v931
          %s933 = sadd.f32 %s922, %s932
          %s934 = scalar_lea.smem [#allocation3], 2
          %935 = sst [smem:[%s934]] %s933
          %s936 = sld [smem:[#allocation4 + $0x2]]
          %v937 = vmul.f32 %v920, %v920
          %v938 = vmul.f32 %v937, %v597
          %939 = vadd.xlane.f32.xlu0 %v938
          %v940 = vpop.xlane.xlu0 %939
          %v941 = vrot.slane %v940, 4
          %v942 = vadd.f32 %v940, %v941
          %v943 = vrot.slane %v942, 2
          %v944 = vadd.f32 %v942, %v943
          %v945 = vrot.slane %v944, 1
          %v946 = vadd.f32 %v944, %v945
          %s947 = vtos %v946
          %s948 = sadd.f32 %s936, %s947
          %s949 = scalar_lea.smem [#allocation4], 2
          %950 = sst [smem:[%s949]] %s948
          %s951 = sld [smem:[#allocation13 + $0x3]]
          %v952 = vstv %s951
          %v953 = vadd.f32 %v848, %v952
          %954 = vst [vmem:[%s854 + $0x18] sm:$0xff] %v953
          %s955 = sld [smem:[#allocation3 + $0x3]]
          %v956 = vmul.f32 %v953, %v597
          %957 = vadd.xlane.f32.xlu0 %v956
          %v958 = vpop.xlane.xlu0 %957
          %v959 = vrot.slane %v958, 4
          %v960 = vadd.f32 %v958, %v959
          %v961 = vrot.slane %v960, 2
          %v962 = vadd.f32 %v960, %v961
          %v963 = vrot.slane %v962, 1
          %v964 = vadd.f32 %v962, %v963
          %s965 = vtos %v964
          %s966 = sadd.f32 %s955, %s965
          %s967 = scalar_lea.smem [#allocation3], 3
          %968 = sst [smem:[%s967]] %s966
          %s969 = sld [smem:[#allocation4 + $0x3]]
          %v970 = vmul.f32 %v953, %v953
          %v971 = vmul.f32 %v970, %v597
          %972 = vadd.xlane.f32.xlu0 %v971
          %v973 = vpop.xlane.xlu0 %972
          %v974 = vrot.slane %v973, 4
          %v975 = vadd.f32 %v973, %v974
          %v976 = vrot.slane %v975, 2
          %v977 = vadd.f32 %v975, %v976
          %v978 = vrot.slane %v977, 1
          %v979 = vadd.f32 %v977, %v978
          %s980 = vtos %v979
          %s981 = sadd.f32 %s969, %s980
          %s982 = scalar_lea.smem [#allocation4], 3
          %983 = sst [smem:[%s982]] %s981
        $region112: #{tpu_custom_call.1} parent=63 // pred_fallthru
          _
        %p984 = scmp.eq.s32.totalorder %s38, 1
        // Predicated region
        $region113: #{tpu_custom_call.1} parent=63 // pred_check
          %p985 = pneg %p984
        $region114: #{tpu_custom_call.1} parent=63 // pred_check_branch
          %987 = sbr.rel (%p985) target = $region116
        $region115: #{tpu_custom_call.1} parent=63 // pred_region
          %v988 = vlaneseq
          %v989 = vshrl.u32 %v988, 7
          %v990 = vlaneseq
          %v991 = vand.u32 %v990, 127
          %v992 = vstv %s545
          %v993 = vadd.s32 %v991, %v992
          %v994 = vmul.u32 %v993, 8
          %v995 = vadd.s32 %v994, %v989
          %vm996 = vcmp.lt.s32.totalorder %v995, 8
          %v997 = vsel %vm996, 1, 0
          %v998 = vcvt.s32.f32 %v997
          %s999 = sld [smem:[#allocation3]]
          %s1000 = smul.f32 %s999, 0.125
          %s1001 = sld [smem:[#allocation4]]
          %s1002 = smul.f32 %s1001, 0.125
          %s1003 = smul.f32 %s1000, %s1000
          %s1004 = ssub.f32 %s1002, %s1003
          %s1005 = sshra.s32 %s545, 7
          %s1006 = sand.u32 %s545, 127
          %s1007 = scalar_lea.vmem [#allocation2], %s1005
          %v1008 = vld [vmem:[%s1007] sm:$0xff]
          %s1009 = sadd.f32 %s1004, 1e-05
          %v1010 = vstv %s1009
          %v1011 = vrsqrt.pop %v1010
          %v1012 = vstv %s1000
          %v1013 = vsub.f32 %v1008, %v1012
          %v1014 = vmul.f32 %v1013, %v1011
          %s1015 = sld [smem:[#allocation15]]
          %v1016 = vstv %s1015
          %v1017 = vmul.f32 %v1014, %v1016
          %s1018 = sld [smem:[#allocation16]]
          %v1019 = vstv %s1018
          %v1020 = vadd.f32 %v1017, %v1019
          %vm1021 = vcmp.gt.f32.partialorder %v1020, 0.0
          %v1022 = vmul.f32 %v1020, 0.2
          %v1023 = vsel %vm1021, %v1020, %v1022
          %s1024 = sld [smem:[#allocation3 + $0x1]]
          %s1025 = smul.f32 %s1024, 0.125
          %s1026 = sld [smem:[#allocation4 + $0x1]]
          %s1027 = smul.f32 %s1026, 0.125
          %s1028 = smul.f32 %s1025, %s1025
          %s1029 = ssub.f32 %s1027, %s1028
          %v1030 = vld [vmem:[%s1007 + $0x8] sm:$0xff]
          %s1031 = sadd.f32 %s1029, 1e-05
          %v1032 = vstv %s1031
          %v1033 = vrsqrt.pop %v1032
          %v1034 = vstv %s1025
          %v1035 = vsub.f32 %v1030, %v1034
          %v1036 = vmul.f32 %v1035, %v1033
          %s1037 = sld [smem:[#allocation15 + $0x1]]
          %v1038 = vstv %s1037
          %v1039 = vmul.f32 %v1036, %v1038
          %s1040 = sld [smem:[#allocation16 + $0x1]]
          %v1041 = vstv %s1040
          %v1042 = vadd.f32 %v1039, %v1041
          %vm1043 = vcmp.gt.f32.partialorder %v1042, 0.0
          %v1044 = vmul.f32 %v1042, 0.2
          %v1045 = vsel %vm1043, %v1042, %v1044
          %s1046 = sld [smem:[#allocation3 + $0x2]]
          %s1047 = smul.f32 %s1046, 0.125
          %s1048 = sld [smem:[#allocation4 + $0x2]]
          %s1049 = smul.f32 %s1048, 0.125
          %s1050 = smul.f32 %s1047, %s1047
          %s1051 = ssub.f32 %s1049, %s1050
          %v1052 = vld [vmem:[%s1007 + $0x10] sm:$0xff]
          %s1053 = sadd.f32 %s1051, 1e-05
          %v1054 = vstv %s1053
          %v1055 = vrsqrt.pop %v1054
          %v1056 = vstv %s1047
          %v1057 = vsub.f32 %v1052, %v1056
          %v1058 = vmul.f32 %v1057, %v1055
          %s1059 = sld [smem:[#allocation15 + $0x2]]
          %v1060 = vstv %s1059
          %v1061 = vmul.f32 %v1058, %v1060
          %s1062 = sld [smem:[#allocation16 + $0x2]]
          %v1063 = vstv %s1062
          %v1064 = vadd.f32 %v1061, %v1063
          %vm1065 = vcmp.gt.f32.partialorder %v1064, 0.0
          %v1066 = vmul.f32 %v1064, 0.2
          %v1067 = vsel %vm1065, %v1064, %v1066
          %s1068 = sld [smem:[#allocation3 + $0x3]]
          %s1069 = smul.f32 %s1068, 0.125
          %s1070 = sld [smem:[#allocation4 + $0x3]]
          %s1071 = smul.f32 %s1070, 0.125
          %s1072 = smul.f32 %s1069, %s1069
          %s1073 = ssub.f32 %s1071, %s1072
          %v1074 = vld [vmem:[%s1007 + $0x18] sm:$0xff]
          %s1075 = sadd.f32 %s1073, 1e-05
          %v1076 = vstv %s1075
          %v1077 = vrsqrt.pop %v1076
          %v1078 = vstv %s1069
          %v1079 = vsub.f32 %v1074, %v1078
          %v1080 = vmul.f32 %v1079, %v1077
          %s1081 = sld [smem:[#allocation15 + $0x3]]
          %v1082 = vstv %s1081
          %v1083 = vmul.f32 %v1080, %v1082
          %s1084 = sld [smem:[#allocation16 + $0x3]]
          %v1085 = vstv %s1084
          %v1086 = vadd.f32 %v1083, %v1085
          %vm1087 = vcmp.gt.f32.partialorder %v1086, 0.0
          %v1088 = vmul.f32 %v1086, 0.2
          %v1089 = vsel %vm1087, %v1086, %v1088
          %s1090 = sld [smem:[#allocation18]]
          %v1091 = vstv %s1090
          %v1092 = vmul.f32 %v1023, %v1091
          %s1093 = sld [smem:[#allocation18 + $0x4]]
          %v1094 = vstv %s1093
          %v1095 = vmul.f32 %v1045, %v1094
          %v1096 = vadd.f32 %v1092, %v1095
          %s1097 = sld [smem:[#allocation18 + $0x8]]
          %v1098 = vstv %s1097
          %v1099 = vmul.f32 %v1067, %v1098
          %v1100 = vadd.f32 %v1096, %v1099
          %s1101 = sld [smem:[#allocation18 + $0xc]]
          %v1102 = vstv %s1101
          %v1103 = vmul.f32 %v1089, %v1102
          %v1104 = vadd.f32 %v1100, %v1103
          %s1105 = sld [smem:[#allocation19]]
          %v1106 = vstv %s1105
          %v1107 = vadd.f32 %v1104, %v1106
          %1108 = vst [vmem:[%s1007 + $0x20] sm:$0xff] %v1107
          %s1109 = sld [smem:[#allocation5]]
          %v1110 = vmul.f32 %v1107, %v998
          %1111 = vadd.xlane.f32.xlu0 %v1110
          %v1112 = vpop.xlane.xlu0 %1111
          %v1113 = vrot.slane %v1112, 4
          %v1114 = vadd.f32 %v1112, %v1113
          %v1115 = vrot.slane %v1114, 2
          %v1116 = vadd.f32 %v1114, %v1115
          %v1117 = vrot.slane %v1116, 1
          %v1118 = vadd.f32 %v1116, %v1117
          %s1119 = vtos %v1118
          %s1120 = sadd.f32 %s1109, %s1119
          %s1121 = scalar_lea.smem [#allocation5], 0
          %1122 = sst [smem:[%s1121]] %s1120
          %s1123 = sld [smem:[#allocation6]]
          %v1124 = vmul.f32 %v1107, %v1107
          %v1125 = vmul.f32 %v1124, %v998
          %1126 = vadd.xlane.f32.xlu0 %v1125
          %v1127 = vpop.xlane.xlu0 %1126
          %v1128 = vrot.slane %v1127, 4
          %v1129 = vadd.f32 %v1127, %v1128
          %v1130 = vrot.slane %v1129, 2
          %v1131 = vadd.f32 %v1129, %v1130
          %v1132 = vrot.slane %v1131, 1
          %v1133 = vadd.f32 %v1131, %v1132
          %s1134 = vtos %v1133
          %s1135 = sadd.f32 %s1123, %s1134
          %s1136 = scalar_lea.smem [#allocation6], 0
          %1137 = sst [smem:[%s1136]] %s1135
          %s1138 = sld [smem:[#allocation18 + $0x1]]
          %v1139 = vstv %s1138
          %v1140 = vmul.f32 %v1023, %v1139
          %s1141 = sld [smem:[#allocation18 + $0x5]]
          %v1142 = vstv %s1141
          %v1143 = vmul.f32 %v1045, %v1142
          %v1144 = vadd.f32 %v1140, %v1143
          %s1145 = sld [smem:[#allocation18 + $0x9]]
          %v1146 = vstv %s1145
          %v1147 = vmul.f32 %v1067, %v1146
          %v1148 = vadd.f32 %v1144, %v1147
          %s1149 = sld [smem:[#allocation18 + $0xd]]
          %v1150 = vstv %s1149
          %v1151 = vmul.f32 %v1089, %v1150
          %v1152 = vadd.f32 %v1148, %v1151
          %s1153 = sld [smem:[#allocation19 + $0x1]]
          %v1154 = vstv %s1153
          %v1155 = vadd.f32 %v1152, %v1154
          %1156 = vst [vmem:[%s1007 + $0x28] sm:$0xff] %v1155
          %s1157 = sld [smem:[#allocation5 + $0x1]]
          %v1158 = vmul.f32 %v1155, %v998
          %1159 = vadd.xlane.f32.xlu0 %v1158
          %v1160 = vpop.xlane.xlu0 %1159
          %v1161 = vrot.slane %v1160, 4
          %v1162 = vadd.f32 %v1160, %v1161
          %v1163 = vrot.slane %v1162, 2
          %v1164 = vadd.f32 %v1162, %v1163
          %v1165 = vrot.slane %v1164, 1
          %v1166 = vadd.f32 %v1164, %v1165
          %s1167 = vtos %v1166
          %s1168 = sadd.f32 %s1157, %s1167
          %s1169 = scalar_lea.smem [#allocation5], 1
          %1170 = sst [smem:[%s1169]] %s1168
          %s1171 = sld [smem:[#allocation6 + $0x1]]
          %v1172 = vmul.f32 %v1155, %v1155
          %v1173 = vmul.f32 %v1172, %v998
          %1174 = vadd.xlane.f32.xlu0 %v1173
          %v1175 = vpop.xlane.xlu0 %1174
          %v1176 = vrot.slane %v1175, 4
          %v1177 = vadd.f32 %v1175, %v1176
          %v1178 = vrot.slane %v1177, 2
          %v1179 = vadd.f32 %v1177, %v1178
          %v1180 = vrot.slane %v1179, 1
          %v1181 = vadd.f32 %v1179, %v1180
          %s1182 = vtos %v1181
          %s1183 = sadd.f32 %s1171, %s1182
          %s1184 = scalar_lea.smem [#allocation6], 1
          %1185 = sst [smem:[%s1184]] %s1183
          %s1186 = sld [smem:[#allocation18 + $0x2]]
          %v1187 = vstv %s1186
          %v1188 = vmul.f32 %v1023, %v1187
          %s1189 = sld [smem:[#allocation18 + $0x6]]
          %v1190 = vstv %s1189
          %v1191 = vmul.f32 %v1045, %v1190
          %v1192 = vadd.f32 %v1188, %v1191
          %s1193 = sld [smem:[#allocation18 + $0xa]]
          %v1194 = vstv %s1193
          %v1195 = vmul.f32 %v1067, %v1194
          %v1196 = vadd.f32 %v1192, %v1195
          %s1197 = sld [smem:[#allocation18 + $0xe]]
          %v1198 = vstv %s1197
          %v1199 = vmul.f32 %v1089, %v1198
          %v1200 = vadd.f32 %v1196, %v1199
          %s1201 = sld [smem:[#allocation19 + $0x2]]
          %v1202 = vstv %s1201
          %v1203 = vadd.f32 %v1200, %v1202
          %1204 = vst [vmem:[%s1007 + $0x30] sm:$0xff] %v1203
          %s1205 = sld [smem:[#allocation5 + $0x2]]
          %v1206 = vmul.f32 %v1203, %v998
          %1207 = vadd.xlane.f32.xlu0 %v1206
          %v1208 = vpop.xlane.xlu0 %1207
          %v1209 = vrot.slane %v1208, 4
          %v1210 = vadd.f32 %v1208, %v1209
          %v1211 = vrot.slane %v1210, 2
          %v1212 = vadd.f32 %v1210, %v1211
          %v1213 = vrot.slane %v1212, 1
          %v1214 = vadd.f32 %v1212, %v1213
          %s1215 = vtos %v1214
          %s1216 = sadd.f32 %s1205, %s1215
          %s1217 = scalar_lea.smem [#allocation5], 2
          %1218 = sst [smem:[%s1217]] %s1216
          %s1219 = sld [smem:[#allocation6 + $0x2]]
          %v1220 = vmul.f32 %v1203, %v1203
          %v1221 = vmul.f32 %v1220, %v998
          %1222 = vadd.xlane.f32.xlu0 %v1221
          %v1223 = vpop.xlane.xlu0 %1222
          %v1224 = vrot.slane %v1223, 4
          %v1225 = vadd.f32 %v1223, %v1224
          %v1226 = vrot.slane %v1225, 2
          %v1227 = vadd.f32 %v1225, %v1226
          %v1228 = vrot.slane %v1227, 1
          %v1229 = vadd.f32 %v1227, %v1228
          %s1230 = vtos %v1229
          %s1231 = sadd.f32 %s1219, %s1230
          %s1232 = scalar_lea.smem [#allocation6], 2
          %1233 = sst [smem:[%s1232]] %s1231
          %s1234 = sld [smem:[#allocation18 + $0x3]]
          %v1235 = vstv %s1234
          %v1236 = vmul.f32 %v1023, %v1235
          %s1237 = sld [smem:[#allocation18 + $0x7]]
          %v1238 = vstv %s1237
          %v1239 = vmul.f32 %v1045, %v1238
          %v1240 = vadd.f32 %v1236, %v1239
          %s1241 = sld [smem:[#allocation18 + $0xb]]
          %v1242 = vstv %s1241
          %v1243 = vmul.f32 %v1067, %v1242
          %v1244 = vadd.f32 %v1240, %v1243
          %s1245 = sld [smem:[#allocation18 + $0xf]]
          %v1246 = vstv %s1245
          %v1247 = vmul.f32 %v1089, %v1246
          %v1248 = vadd.f32 %v1244, %v1247
          %s1249 = sld [smem:[#allocation19 + $0x3]]
          %v1250 = vstv %s1249
          %v1251 = vadd.f32 %v1248, %v1250
          %1252 = vst [vmem:[%s1007 + $0x38] sm:$0xff] %v1251
          %s1253 = sld [smem:[#allocation5 + $0x3]]
          %v1254 = vmul.f32 %v1251, %v998
          %1255 = vadd.xlane.f32.xlu0 %v1254
          %v1256 = vpop.xlane.xlu0 %1255
          %v1257 = vrot.slane %v1256, 4
          %v1258 = vadd.f32 %v1256, %v1257
          %v1259 = vrot.slane %v1258, 2
          %v1260 = vadd.f32 %v1258, %v1259
          %v1261 = vrot.slane %v1260, 1
          %v1262 = vadd.f32 %v1260, %v1261
          %s1263 = vtos %v1262
          %s1264 = sadd.f32 %s1253, %s1263
          %s1265 = scalar_lea.smem [#allocation5], 3
          %1266 = sst [smem:[%s1265]] %s1264
          %s1267 = sld [smem:[#allocation6 + $0x3]]
          %v1268 = vmul.f32 %v1251, %v1251
          %v1269 = vmul.f32 %v1268, %v998
          %1270 = vadd.xlane.f32.xlu0 %v1269
          %v1271 = vpop.xlane.xlu0 %1270
          %v1272 = vrot.slane %v1271, 4
          %v1273 = vadd.f32 %v1271, %v1272
          %v1274 = vrot.slane %v1273, 2
          %v1275 = vadd.f32 %v1273, %v1274
          %v1276 = vrot.slane %v1275, 1
          %v1277 = vadd.f32 %v1275, %v1276
          %s1278 = vtos %v1277
          %s1279 = sadd.f32 %s1267, %s1278
          %s1280 = scalar_lea.smem [#allocation6], 3
          %1281 = sst [smem:[%s1280]] %s1279
        $region116: #{tpu_custom_call.1} parent=63 // pred_fallthru
          _
        %p1282 = scmp.eq.s32.totalorder %s38, 2
        // Predicated region
        $region117: #{tpu_custom_call.1} parent=63 // pred_check
          %p1283 = pneg %p1282
        $region118: #{tpu_custom_call.1} parent=63 // pred_check_branch
          %1285 = sbr.rel (%p1283) target = $region120
        $region119: #{tpu_custom_call.1} parent=63 // pred_region
          %s1286 = sld [smem:[#allocation5]]
          %s1287 = smul.f32 %s1286, 0.125
          %s1288 = sld [smem:[#allocation6]]
          %s1289 = smul.f32 %s1288, 0.125
          %s1290 = smul.f32 %s1287, %s1287
          %s1291 = ssub.f32 %s1289, %s1290
          %s1292 = sshra.s32 %s545, 7
          %s1293 = sand.u32 %s545, 127
          %s1294 = scalar_lea.vmem [#allocation2], %s1292
          %v1295 = vld [vmem:[%s1294 + $0x20] sm:$0xff]
          %s1296 = sadd.f32 %s1291, 1e-05
          %v1297 = vstv %s1296
          %v1298 = vrsqrt.pop %v1297
          %v1299 = vstv %s1287
          %v1300 = vsub.f32 %v1295, %v1299
          %v1301 = vmul.f32 %v1300, %v1298
          %s1302 = sld [smem:[#allocation21]]
          %v1303 = vstv %s1302
          %v1304 = vmul.f32 %v1301, %v1303
          %s1305 = sld [smem:[#allocation22]]
          %v1306 = vstv %s1305
          %v1307 = vadd.f32 %v1304, %v1306
          %vm1308 = vcmp.gt.f32.partialorder %v1307, 0.0
          %v1309 = vmul.f32 %v1307, 0.2
          %v1310 = vsel %vm1308, %v1307, %v1309
          %s1311 = sld [smem:[#allocation24]]
          %v1312 = vstv %s1311
          %v1313 = vmul.f32 %v1310, %v1312
          %s1314 = sld [smem:[#allocation5 + $0x1]]
          %s1315 = smul.f32 %s1314, 0.125
          %s1316 = sld [smem:[#allocation6 + $0x1]]
          %s1317 = smul.f32 %s1316, 0.125
          %s1318 = smul.f32 %s1315, %s1315
          %s1319 = ssub.f32 %s1317, %s1318
          %v1320 = vld [vmem:[%s1294 + $0x28] sm:$0xff]
          %s1321 = sadd.f32 %s1319, 1e-05
          %v1322 = vstv %s1321
          %v1323 = vrsqrt.pop %v1322
          %v1324 = vstv %s1315
          %v1325 = vsub.f32 %v1320, %v1324
          %v1326 = vmul.f32 %v1325, %v1323
          %s1327 = sld [smem:[#allocation21 + $0x1]]
          %v1328 = vstv %s1327
          %v1329 = vmul.f32 %v1326, %v1328
          %s1330 = sld [smem:[#allocation22 + $0x1]]
          %v1331 = vstv %s1330
          %v1332 = vadd.f32 %v1329, %v1331
          %vm1333 = vcmp.gt.f32.partialorder %v1332, 0.0
          %v1334 = vmul.f32 %v1332, 0.2
          %v1335 = vsel %vm1333, %v1332, %v1334
          %s1336 = sld [smem:[#allocation24 + $0x1]]
          %v1337 = vstv %s1336
          %v1338 = vmul.f32 %v1335, %v1337
          %v1339 = vadd.f32 %v1313, %v1338
          %s1340 = sld [smem:[#allocation5 + $0x2]]
          %s1341 = smul.f32 %s1340, 0.125
          %s1342 = sld [smem:[#allocation6 + $0x2]]
          %s1343 = smul.f32 %s1342, 0.125
          %s1344 = smul.f32 %s1341, %s1341
          %s1345 = ssub.f32 %s1343, %s1344
          %v1346 = vld [vmem:[%s1294 + $0x30] sm:$0xff]
          %s1347 = sadd.f32 %s1345, 1e-05
          %v1348 = vstv %s1347
          %v1349 = vrsqrt.pop %v1348
          %v1350 = vstv %s1341
          %v1351 = vsub.f32 %v1346, %v1350
          %v1352 = vmul.f32 %v1351, %v1349
          %s1353 = sld [smem:[#allocation21 + $0x2]]
          %v1354 = vstv %s1353
          %v1355 = vmul.f32 %v1352, %v1354
          %s1356 = sld [smem:[#allocation22 + $0x2]]
          %v1357 = vstv %s1356
          %v1358 = vadd.f32 %v1355, %v1357
          %vm1359 = vcmp.gt.f32.partialorder %v1358, 0.0
          %v1360 = vmul.f32 %v1358, 0.2
          %v1361 = vsel %vm1359, %v1358, %v1360
          %s1362 = sld [smem:[#allocation24 + $0x2]]
          %v1363 = vstv %s1362
          %v1364 = vmul.f32 %v1361, %v1363
          %v1365 = vadd.f32 %v1339, %v1364
          %s1366 = sld [smem:[#allocation5 + $0x3]]
          %s1367 = smul.f32 %s1366, 0.125
          %s1368 = sld [smem:[#allocation6 + $0x3]]
          %s1369 = smul.f32 %s1368, 0.125
          %s1370 = smul.f32 %s1367, %s1367
          %s1371 = ssub.f32 %s1369, %s1370
          %v1372 = vld [vmem:[%s1294 + $0x38] sm:$0xff]
          %s1373 = sadd.f32 %s1371, 1e-05
          %v1374 = vstv %s1373
          %v1375 = vrsqrt.pop %v1374
          %v1376 = vstv %s1367
          %v1377 = vsub.f32 %v1372, %v1376
          %v1378 = vmul.f32 %v1377, %v1375
          %s1379 = sld [smem:[#allocation21 + $0x3]]
          %v1380 = vstv %s1379
          %v1381 = vmul.f32 %v1378, %v1380
          %s1382 = sld [smem:[#allocation22 + $0x3]]
          %v1383 = vstv %s1382
          %v1384 = vadd.f32 %v1381, %v1383
          %vm1385 = vcmp.gt.f32.partialorder %v1384, 0.0
          %v1386 = vmul.f32 %v1384, 0.2
          %v1387 = vsel %vm1385, %v1384, %v1386
          %s1388 = sld [smem:[#allocation24 + $0x3]]
          %v1389 = vstv %s1388
          %v1390 = vmul.f32 %v1387, %v1389
          %v1391 = vadd.f32 %v1365, %v1390
          %s1392 = sld [smem:[#allocation7]]
          %v1393 = vstv %s1392
          %v1394 = vadd.f32 %v1391, %v1393
          %v1395 = vsub.f32 0.0, %v1394
          %v1396 = vmul.f32 %v1395, 1.442695
          %v1397 = vpow.pop %v1396
          %v1398 = vadd.f32 %v1397, 1.0
          %v1399 = vrcp.pop %v1398
          %1400 = vst [vmem:[%s540] sm:$0xff] %v1399
        $region120: #{tpu_custom_call.1} parent=63 // pred_fallthru
          _
        %s1401 = sand.u32 %s298, 1
        %s1402 = scalar_lea.sflag [#allocation10], %s1401
        %s1403 = sand.u32 %s298, 1
        %s1404 = smul.addr %s1403, 8
        %s1405 = scalar_lea.vmem [#allocation25], %s1404
        // Predicated region
        $region121: #{tpu_custom_call.1} parent=63 // pred_check
          %p1406 = pneg %p308
        $region122: #{tpu_custom_call.1} parent=63 // pred_check_branch
          %1408 = sbr.rel (%p1406) target = $region124
        $region123: #{tpu_custom_call.1} parent=63 // pred_region
          %p1409 = scmp.eq.s32.totalorder %s38, 2
          %s1410 = scalar_select %p1409, %s39, 0
          %s1412 = ssub.s32 128, 128
          %1413 = vsyncadd %s1402, %s1412
          %s1414 = smul.addr %s1410, 128
          %s1415 = scalar_lea.hbm %s11, %s1414
          %s1417 = sshll.u32 %s1405, 4
          %s1418 = int_to_ptr.vmem [resolvable:$true] %s1417
          %1420 = dma.vmem_to_hbm [thread:$0]  %s1418, 128, %s1415, %s1402
        $region124: #{tpu_custom_call.1} parent=63 // pred_fallthru
          _
      $region64: #{tpu_custom_call.1} parent=5 // pred_fallthru
        _
      %p1421 = scmp.le.s32.totalorder 2, %s29
      // Predicated region
      $region125: #{tpu_custom_call.1} parent=5 // pred_check
        %p1422 = pneg %p1421
      $region126: #{tpu_custom_call.1} parent=5 // pred_check_branch
        %1424 = sbr.rel (%p1422) target = $region128
      $region127: #{tpu_custom_call.1} parent=5 // pred_region
        %s1425 = ssub.s32 %s29, 2
        // Predicated region
        $region129: #{tpu_custom_call.1} parent=127 // pred_check
          %p1426 = pneg %p314
        $region130: #{tpu_custom_call.1} parent=127 // pred_check_branch
          %1428 = sbr.rel (%p1426) target = $region132
        $region131: #{tpu_custom_call.1} parent=127 // pred_region
          %s1429 = sand.u32 %s299, 1
          %s1430 = scalar_lea.sflag [#allocation10], %s1429
          %s1431 = sand.u32 %s299, 1
          %s1432 = smul.addr %s1431, 8
          %s1433 = scalar_lea.vmem [#allocation25], %s1432
          %1434 = dma.done %s1430, 128
        $region132: #{tpu_custom_call.1} parent=127 // pred_fallthru
          _
      $region128: #{tpu_custom_call.1} parent=5 // pred_fallthru
        _
    $region6: #{tpu_custom_call.1} parent=1 // loop_footer
      %s33 = sadd.s32 1, %s29
    $region7: #{tpu_custom_call.1} parent=1 // loop_footer_branch
      %28 = sbr.rel target = $region3
    $region8: #{tpu_custom_call.1} parent=1 // loop_exit
      _
    %1435 = vsyncpa [#allocation9], 1
    %s1436 = scalar_lea.sflag [#allocation9], 1
    %1437 = vsyncpa %s1436, 1
    %1438 = vsyncpa [#allocation10], 1
    %s1439 = scalar_lea.sflag [#allocation10], 1
    %1440 = vsyncpa %s1439, 1
    %1441 = vsyncpa [#allocation11], 1
    %s1442 = scalar_lea.sflag [#allocation11], 1
    %1443 = vsyncpa %s1442, 1
    %1444 = vsyncpa [#allocation14], 1
    %1445 = vsyncpa [#allocation17], 1
    %1446 = vsyncpa [#allocation20], 1
    %1447 = vsyncpa [#allocation23], 1

</llo_original>
